<compile_context>
chip_gen: v7x
topology: tpu7x:2x2x1
jax: 0.10.0
libtpu: 0.0.40
codegen_flags: <defaults>
</compile_context>

<pallas_src>
import functools

import jax
import jax.numpy as jnp
from jax import lax
from jax.experimental import pallas as pl
from jax.experimental.pallas import tpu as pltpu

# ----------------------------------------------------------------------------
# Static feature-boundary indices (Adult-style tabular layout, sums to 29)
# ----------------------------------------------------------------------------
INDEX_AGE = 1
INDEX_HOURS = 2
INDEX_WORKCLASS = 9
INDEX_EDUCATION = 17
INDEX_MARITAL = 21
INDEX_OCCUPATION = 26
INDEX_RACE = 28
INDEX_GENDER = 29

IN_DIM = 29
# Original (unfused) layer dims, (fan_in, fan_out).
ENC_DIMS = [(29, 128), (128, 64), (64, 12), (12, 3)]
DEC_DIMS = [(3, 12), (12, 64), (64, 128), (128, 29)]
# After fusing the activation-free latent pair (12->3)+(3->12) into (12->12).
FUSED_DIMS = [(29, 128), (128, 64), (64, 12), (12, 12), (12, 64), (64, 128), (128, 29)]


# ----------------------------------------------------------------------------
# Kernel: one (29, TB) feature-major batch tile through all (fused) layers.
# Weights are (out, in) bf16, biases (out, 1) f32; MXU accumulates in f32.
# ----------------------------------------------------------------------------
def autoencoder_kernel(
    x_ref,                          # (29, TB) f32, batch on the lane axis
    w1, b1, w2, b2, w3, b3,         # encoder 29->128->64->12
    w45, b45,                       # fused latent 12->(3)->12
    w6, b6, w7, b7, w8, b8,         # decoder 12->64->128->29
    out_ref,                        # (29, TB) f32
):
    def linear_relu_bf16(h, w_ref, b_ref):
        # (out, in) @ (in, TB) -> (out, TB), f32 accumulation on the MXU.
        y = jnp.dot(w_ref[...], h, preferred_element_type=jnp.float32) + b_ref[...]
        # ReLU in f32 (portable incl. v5e), carry activations bf16 between layers.
        return jnp.maximum(y, 0.0).astype(jnp.bfloat16)

    h = x_ref[...].astype(jnp.bfloat16)

    h = linear_relu_bf16(h, w1, b1)
    h = linear_relu_bf16(h, w2, b2)
    h = linear_relu_bf16(h, w3, b3)
    h = linear_relu_bf16(h, w45, b45)   # exact fusion of L4 (no act) + L5 + ReLU
    h = linear_relu_bf16(h, w6, b6)
    h = linear_relu_bf16(h, w7, b7)
    y = jnp.dot(w8[...], h, preferred_element_type=jnp.float32) + b8[...]  # (29, TB) f32

    # Rows [0, INDEX_HOURS) pass through; the rest go through sigmoid.
    # sigmoid(x) = 0.5*(tanh(x/2)+1) keeps the transcendental on the EUP slot.
    # Mask is a single-vreg (29, 1) iota+cmp, lane-broadcast in the select.
    row = lax.broadcasted_iota(jnp.int32, (IN_DIM, 1), 0)
    sig = 0.5 * (jnp.tanh(0.5 * y) + 1.0)
    out_ref[...] = jnp.where(row >= INDEX_HOURS, sig, y).astype(out_ref.dtype)


# ----------------------------------------------------------------------------
# Batch-tile choice: lane-dense (multiple of 128) and at least 2 grid steps
# when the batch allows it (feeds both v7x TensorCores via "parallel").
# ----------------------------------------------------------------------------
def _choose_batch_tile(batch, block_batch):
    if batch <= 128:
        return batch                      # full-extent block on the lane axis
    tb = -(-batch // 2)                   # aim for >= 2 grid steps
    tb = ((tb + 127) // 128) * 128        # lane-dense multiple of 128
    return min(tb, block_batch)


# ----------------------------------------------------------------------------
# Wrapper
# ----------------------------------------------------------------------------
@functools.partial(jax.jit, static_argnames=("block_batch",))
def autoencoder_forward(x, fused_params, *, block_batch=512):
    """x: (B, 29) f32; fused_params: [w1,b1,...,w8,b8] with W (out, in) bf16
    and b (out, 1) f32 (see prepare_params)."""
    B = x.shape[0]
    bb = max(128, (int(block_batch) // 128) * 128)
    tb = _choose_batch_tile(B, bb)
    grid = (pl.cdiv(B, tb),)

    xt = x.T                              # (29, B): feature-major, batch on lanes

    x_spec = pl.BlockSpec((IN_DIM, tb), lambda i: (0, i))
    out_spec = pl.BlockSpec((IN_DIM, tb), lambda i: (0, i))
    # Constant index_map -> weights/biases stay VMEM-resident across batch tiles.
    param_specs = [pl.BlockSpec(p.shape, lambda i: (0, 0)) for p in fused_params]

    flops = 2 * B * sum(fi * fo for fi, fo in FUSED_DIMS)
    weight_bytes = sum(fi * fo * 2 + fo * 4 for fi, fo in FUSED_DIMS)  # bf16 W + f32 b
    cost = pl.CostEstimate(
        flops=flops,
        transcendentals=B * IN_DIM,       # tanh evaluated on all rows, masked after
        bytes_accessed=2 * B * IN_DIM * 4 + weight_bytes,
    )

    out_t = pl.pallas_call(
        autoencoder_kernel,
        out_shape=jax.ShapeDtypeStruct((IN_DIM, B), jnp.float32),
        grid=grid,
        in_specs=[x_spec] + param_specs,
        out_specs=out_spec,
        compiler_params=pltpu.CompilerParams(
            dimension_semantics=("parallel",),   # megacore sharding on v7x
        ),
        cost_estimate=cost,
    )(xt, *fused_params)

    return out_t.T                        # back to (B, 29)


# ----------------------------------------------------------------------------
# Parameter prep: fuse the activation-free latent pair, transpose weights to
# (out, in) for the feature-major kernel, cast W -> bf16, b -> (out, 1) f32.
# ----------------------------------------------------------------------------
def prepare_params(params, weight_dtype=jnp.bfloat16):
    w1, b1, w2, b2, w3, b3, w4, b4, w5, b5, w6, b6, w7, b7, w8, b8 = params
    w45 = w4 @ w5                         # (12,3)@(3,12) -> (12,12), exact fusion
    b45 = b4 @ w5 + b5                    # (1,12)
    ws = [w1, w2, w3, w45, w6, w7, w8]    # (in, out)
    bs = [b1, b2, b3, b45, b6, b7, b8]    # (1, out)
    fused = []
    for w, b in zip(ws, bs):
        fused += [w.T.astype(weight_dtype),              # (out, in)
                  b.reshape(-1, 1).astype(jnp.float32)]  # (out, 1)
    return fused


# ----------------------------------------------------------------------------
# Deterministic parameter init (PyTorch-style U(-1/sqrt(fan_in), 1/sqrt(fan_in)))
# ----------------------------------------------------------------------------
def init_params(key):
    params = []
    for (fan_in, fan_out) in ENC_DIMS + DEC_DIMS:
        key, kw, kb = jax.random.split(key, 3)
        bound = 1.0 / jnp.sqrt(jnp.float32(fan_in))
        w = jax.random.uniform(kw, (fan_in, fan_out), jnp.float32, -bound, bound)
        b = jax.random.uniform(kb, (1, fan_out), jnp.float32, -bound, bound)
        params += [w, b]
    return params


# ----------------------------------------------------------------------------
# Pure-JAX f32 reference (unfused, batch-major) for a correctness check
# ----------------------------------------------------------------------------
def reference_forward(x, params):
    h = x
    relu_flags = [True, True, True, False, True, True, True, False]
    for i, relu in enumerate(relu_flags):
        w, b = params[2 * i], params[2 * i + 1]
        h = h @ w + b
        if relu:
            h = jnp.maximum(h, 0.0)
    head = h[:, :INDEX_HOURS]
    tail = jax.nn.sigmoid(h[:, INDEX_HOURS:])
    return jnp.concatenate([head, tail], axis=1)


if __name__ == "__main__":
    key = jax.random.PRNGKey(0)
    key, kx1, kx2 = jax.random.split(key, 3)

    params = init_params(key)
    fused_params = prepare_params(params)

    # Multi-tile path: batch=256, block_batch=128 -> 2 lane-dense grid steps.
    x_big = jax.random.normal(kx1, (256, IN_DIM), jnp.float32)
    out_big = jax.block_until_ready(autoencoder_forward(x_big, fused_params, block_batch=128))
    ref_big = reference_forward(x_big, params)
    assert out_big.shape == (256, IN_DIM)
    assert jnp.allclose(out_big, ref_big, atol=5e-2, rtol=5e-2), "mismatch vs reference (big)"

    # Small single-tile path (full-extent lane block).
    x_small = jax.random.normal(kx2, (8, IN_DIM), jnp.float32)
    out_small = jax.block_until_ready(autoencoder_forward(x_small, fused_params))
    ref_small = reference_forward(x_small, params)
    assert out_small.shape == (8, IN_DIM)
    assert jnp.allclose(out_small, ref_small, atol=5e-2, rtol=5e-2), "mismatch vs reference (small)"

    print("KERNEL_OK")
</pallas_src>

<mosaic_0001>
module attributes {stable_mosaic.version = 11 : i64} {
  func.func @autoencoder_kernel(%arg0: i32, %arg1: memref<29x128xf32, #tpu.memory_space<vmem>>, %arg2: memref<128x29xbf16, #tpu.memory_space<vmem>>, %arg3: memref<128x1xf32, #tpu.memory_space<vmem>>, %arg4: memref<64x128xbf16, #tpu.memory_space<vmem>>, %arg5: memref<64x1xf32, #tpu.memory_space<vmem>>, %arg6: memref<12x64xbf16, #tpu.memory_space<vmem>>, %arg7: memref<12x1xf32, #tpu.memory_space<vmem>>, %arg8: memref<12x12xbf16, #tpu.memory_space<vmem>>, %arg9: memref<12x1xf32, #tpu.memory_space<vmem>>, %arg10: memref<64x12xbf16, #tpu.memory_space<vmem>>, %arg11: memref<64x1xf32, #tpu.memory_space<vmem>>, %arg12: memref<128x64xbf16, #tpu.memory_space<vmem>>, %arg13: memref<128x1xf32, #tpu.memory_space<vmem>>, %arg14: memref<29x128xbf16, #tpu.memory_space<vmem>>, %arg15: memref<29x1xf32, #tpu.memory_space<vmem>>, %arg16: memref<29x128xf32, #tpu.memory_space<vmem>>) attributes {dimension_semantics = [#tpu.dimension_semantics<parallel>], iteration_bounds = array<i64: 2>, scalar_prefetch = 0 : i64, scratch_operands = 0 : i64, tpu.core_type = #tpu.core_type<tc>, window_params = [{transform_indices = @transform_0, window_bounds = array<i64: 29, 128>}, {pipeline_mode = #tpu.pipeline_mode<synchronous>, transform_indices = @transform_1, window_bounds = array<i64: 128, 29>}, {pipeline_mode = #tpu.pipeline_mode<synchronous>, transform_indices = @transform_2, window_bounds = array<i64: 128, 1>}, {pipeline_mode = #tpu.pipeline_mode<synchronous>, transform_indices = @transform_3, window_bounds = array<i64: 64, 128>}, {pipeline_mode = #tpu.pipeline_mode<synchronous>, transform_indices = @transform_4, window_bounds = array<i64: 64, 1>}, {pipeline_mode = #tpu.pipeline_mode<synchronous>, transform_indices = @transform_5, window_bounds = array<i64: 12, 64>}, {pipeline_mode = #tpu.pipeline_mode<synchronous>, transform_indices = @transform_6, window_bounds = array<i64: 12, 1>}, {pipeline_mode = #tpu.pipeline_mode<synchronous>, transform_indices = @transform_7, window_bounds = array<i64: 12, 12>}, {pipeline_mode = #tpu.pipeline_mode<synchronous>, transform_indices = @transform_8, window_bounds = array<i64: 12, 1>}, {pipeline_mode = #tpu.pipeline_mode<synchronous>, transform_indices = @transform_9, window_bounds = array<i64: 64, 12>}, {pipeline_mode = #tpu.pipeline_mode<synchronous>, transform_indices = @transform_10, window_bounds = array<i64: 64, 1>}, {pipeline_mode = #tpu.pipeline_mode<synchronous>, transform_indices = @transform_11, window_bounds = array<i64: 128, 64>}, {pipeline_mode = #tpu.pipeline_mode<synchronous>, transform_indices = @transform_12, window_bounds = array<i64: 128, 1>}, {pipeline_mode = #tpu.pipeline_mode<synchronous>, transform_indices = @transform_13, window_bounds = array<i64: 29, 128>}, {pipeline_mode = #tpu.pipeline_mode<synchronous>, transform_indices = @transform_14, window_bounds = array<i64: 29, 1>}, {transform_indices = @transform_15, window_bounds = array<i64: 29, 128>}]} {
    %c0 = arith.constant 0 : index
    %c0_0 = arith.constant 0 : index
    %0 = vector.load %arg1[%c0, %c0_0] : memref<29x128xf32, #tpu.memory_space<vmem>>, vector<29x128xf32>
    %1 = arith.truncf %0 : vector<29x128xf32> to vector<29x128xbf16>
    %c0_1 = arith.constant 0 : index
    %c0_2 = arith.constant 0 : index
    %2 = vector.load %arg2[%c0_1, %c0_2] : memref<128x29xbf16, #tpu.memory_space<vmem>>, vector<128x29xbf16>
    %cst = arith.constant dense<0.000000e+00> : vector<128x128xf32>
    %3 = tpu.matmul %2, %1, %cst {dimension_numbers = #tpu.dot_dimension_numbers<[1], [0], [0], [1], [0, 0, 1, 1], [], []>} : vector<128x29xbf16>, vector<29x128xbf16>, vector<128x128xf32> -> vector<128x128xf32>
    %c0_3 = arith.constant 0 : index
    %c0_4 = arith.constant 0 : index
    %4 = vector.load %arg3[%c0_3, %c0_4] : memref<128x1xf32, #tpu.memory_space<vmem>>, vector<128x1xf32>
    %5 = vector.broadcast %4 : vector<128x1xf32> to vector<128x128xf32>
    %6 = arith.addf %3, %5 : vector<128x128xf32>
    %cst_5 = arith.constant 0.000000e+00 : f32
    %7 = vector.broadcast %cst_5 : f32 to vector<128x128xf32>
    %8 = arith.maximumf %6, %7 : vector<128x128xf32>
    %9 = arith.truncf %8 : vector<128x128xf32> to vector<128x128xbf16>
    %c0_6 = arith.constant 0 : index
    %c0_7 = arith.constant 0 : index
    %10 = vector.load %arg4[%c0_6, %c0_7] : memref<64x128xbf16, #tpu.memory_space<vmem>>, vector<64x128xbf16>
    %cst_8 = arith.constant dense<0.000000e+00> : vector<64x128xf32>
    %11 = tpu.matmul %10, %9, %cst_8 {dimension_numbers = #tpu.dot_dimension_numbers<[1], [0], [0], [1], [0, 0, 1, 1], [], []>} : vector<64x128xbf16>, vector<128x128xbf16>, vector<64x128xf32> -> vector<64x128xf32>
    %c0_9 = arith.constant 0 : index
    %c0_10 = arith.constant 0 : index
    %12 = vector.load %arg5[%c0_9, %c0_10] : memref<64x1xf32, #tpu.memory_space<vmem>>, vector<64x1xf32>
    %13 = vector.broadcast %12 : vector<64x1xf32> to vector<64x128xf32>
    %14 = arith.addf %11, %13 : vector<64x128xf32>
    %cst_11 = arith.constant 0.000000e+00 : f32
    %15 = vector.broadcast %cst_11 : f32 to vector<64x128xf32>
    %16 = arith.maximumf %14, %15 : vector<64x128xf32>
    %17 = arith.truncf %16 : vector<64x128xf32> to vector<64x128xbf16>
    %c0_12 = arith.constant 0 : index
    %c0_13 = arith.constant 0 : index
    %18 = vector.load %arg6[%c0_12, %c0_13] : memref<12x64xbf16, #tpu.memory_space<vmem>>, vector<12x64xbf16>
    %cst_14 = arith.constant dense<0.000000e+00> : vector<12x128xf32>
    %19 = tpu.matmul %18, %17, %cst_14 {dimension_numbers = #tpu.dot_dimension_numbers<[1], [0], [0], [1], [0, 0, 1, 1], [], []>} : vector<12x64xbf16>, vector<64x128xbf16>, vector<12x128xf32> -> vector<12x128xf32>
    %c0_15 = arith.constant 0 : index
    %c0_16 = arith.constant 0 : index
    %20 = vector.load %arg7[%c0_15, %c0_16] : memref<12x1xf32, #tpu.memory_space<vmem>>, vector<12x1xf32>
    %21 = vector.broadcast %20 : vector<12x1xf32> to vector<12x128xf32>
    %22 = arith.addf %19, %21 : vector<12x128xf32>
    %cst_17 = arith.constant 0.000000e+00 : f32
    %23 = vector.broadcast %cst_17 : f32 to vector<12x128xf32>
    %24 = arith.maximumf %22, %23 : vector<12x128xf32>
    %25 = arith.truncf %24 : vector<12x128xf32> to vector<12x128xbf16>
    %c0_18 = arith.constant 0 : index
    %c0_19 = arith.constant 0 : index
    %26 = vector.load %arg8[%c0_18, %c0_19] : memref<12x12xbf16, #tpu.memory_space<vmem>>, vector<12x12xbf16>
    %cst_20 = arith.constant dense<0.000000e+00> : vector<12x128xf32>
    %27 = tpu.matmul %26, %25, %cst_20 {dimension_numbers = #tpu.dot_dimension_numbers<[1], [0], [0], [1], [0, 0, 1, 1], [], []>} : vector<12x12xbf16>, vector<12x128xbf16>, vector<12x128xf32> -> vector<12x128xf32>
    %c0_21 = arith.constant 0 : index
    %c0_22 = arith.constant 0 : index
    %28 = vector.load %arg9[%c0_21, %c0_22] : memref<12x1xf32, #tpu.memory_space<vmem>>, vector<12x1xf32>
    %29 = vector.broadcast %28 : vector<12x1xf32> to vector<12x128xf32>
    %30 = arith.addf %27, %29 : vector<12x128xf32>
    %cst_23 = arith.constant 0.000000e+00 : f32
    %31 = vector.broadcast %cst_23 : f32 to vector<12x128xf32>
    %32 = arith.maximumf %30, %31 : vector<12x128xf32>
    %33 = arith.truncf %32 : vector<12x128xf32> to vector<12x128xbf16>
    %c0_24 = arith.constant 0 : index
    %c0_25 = arith.constant 0 : index
    %34 = vector.load %arg10[%c0_24, %c0_25] : memref<64x12xbf16, #tpu.memory_space<vmem>>, vector<64x12xbf16>
    %cst_26 = arith.constant dense<0.000000e+00> : vector<64x128xf32>
    %35 = tpu.matmul %34, %33, %cst_26 {dimension_numbers = #tpu.dot_dimension_numbers<[1], [0], [0], [1], [0, 0, 1, 1], [], []>} : vector<64x12xbf16>, vector<12x128xbf16>, vector<64x128xf32> -> vector<64x128xf32>
    %c0_27 = arith.constant 0 : index
    %c0_28 = arith.constant 0 : index
    %36 = vector.load %arg11[%c0_27, %c0_28] : memref<64x1xf32, #tpu.memory_space<vmem>>, vector<64x1xf32>
    %37 = vector.broadcast %36 : vector<64x1xf32> to vector<64x128xf32>
    %38 = arith.addf %35, %37 : vector<64x128xf32>
    %cst_29 = arith.constant 0.000000e+00 : f32
    %39 = vector.broadcast %cst_29 : f32 to vector<64x128xf32>
    %40 = arith.maximumf %38, %39 : vector<64x128xf32>
    %41 = arith.truncf %40 : vector<64x128xf32> to vector<64x128xbf16>
    %c0_30 = arith.constant 0 : index
    %c0_31 = arith.constant 0 : index
    %42 = vector.load %arg12[%c0_30, %c0_31] : memref<128x64xbf16, #tpu.memory_space<vmem>>, vector<128x64xbf16>
    %cst_32 = arith.constant dense<0.000000e+00> : vector<128x128xf32>
    %43 = tpu.matmul %42, %41, %cst_32 {dimension_numbers = #tpu.dot_dimension_numbers<[1], [0], [0], [1], [0, 0, 1, 1], [], []>} : vector<128x64xbf16>, vector<64x128xbf16>, vector<128x128xf32> -> vector<128x128xf32>
    %c0_33 = arith.constant 0 : index
    %c0_34 = arith.constant 0 : index
    %44 = vector.load %arg13[%c0_33, %c0_34] : memref<128x1xf32, #tpu.memory_space<vmem>>, vector<128x1xf32>
    %45 = vector.broadcast %44 : vector<128x1xf32> to vector<128x128xf32>
    %46 = arith.addf %43, %45 : vector<128x128xf32>
    %cst_35 = arith.constant 0.000000e+00 : f32
    %47 = vector.broadcast %cst_35 : f32 to vector<128x128xf32>
    %48 = arith.maximumf %46, %47 : vector<128x128xf32>
    %49 = arith.truncf %48 : vector<128x128xf32> to vector<128x128xbf16>
    %c0_36 = arith.constant 0 : index
    %c0_37 = arith.constant 0 : index
    %50 = vector.load %arg14[%c0_36, %c0_37] : memref<29x128xbf16, #tpu.memory_space<vmem>>, vector<29x128xbf16>
    %cst_38 = arith.constant dense<0.000000e+00> : vector<29x128xf32>
    %51 = tpu.matmul %50, %49, %cst_38 {dimension_numbers = #tpu.dot_dimension_numbers<[1], [0], [0], [1], [0, 0, 1, 1], [], []>} : vector<29x128xbf16>, vector<128x128xbf16>, vector<29x128xf32> -> vector<29x128xf32>
    %c0_39 = arith.constant 0 : index
    %c0_40 = arith.constant 0 : index
    %52 = vector.load %arg15[%c0_39, %c0_40] : memref<29x1xf32, #tpu.memory_space<vmem>>, vector<29x1xf32>
    %53 = vector.broadcast %52 : vector<29x1xf32> to vector<29x128xf32>
    %54 = arith.addf %51, %53 : vector<29x128xf32>
    %55 = tpu.iota {dimensions = array<i32: 0>} : vector<29x1xi32>
    %cst_41 = arith.constant 5.000000e-01 : f32
    %56 = vector.broadcast %cst_41 : f32 to vector<29x128xf32>
    %57 = arith.mulf %56, %54 : vector<29x128xf32>
    %58 = math.tanh %57 : vector<29x128xf32>
    %cst_42 = arith.constant 1.000000e+00 : f32
    %59 = vector.broadcast %cst_42 : f32 to vector<29x128xf32>
    %60 = arith.addf %58, %59 : vector<29x128xf32>
    %cst_43 = arith.constant 5.000000e-01 : f32
    %61 = vector.broadcast %cst_43 : f32 to vector<29x128xf32>
    %62 = arith.mulf %61, %60 : vector<29x128xf32>
    %c2_i32 = arith.constant 2 : i32
    %63 = vector.broadcast %c2_i32 : i32 to vector<29x1xi32>
    %64 = arith.cmpi sge, %55, %63 : vector<29x1xi32>
    %65 = vector.shape_cast %64 : vector<29x1xi1> to vector<29x1xi1>
    %66 = vector.broadcast %65 : vector<29x1xi1> to vector<29x128xi1>
    %67 = arith.select %66, %62, %54 : vector<29x128xi1>, vector<29x128xf32>
    %c0_44 = arith.constant 0 : index
    %c0_45 = arith.constant 0 : index
    %68 = vector.load %arg16[%c0_44, %c0_45] : memref<29x128xf32, #tpu.memory_space<vmem>>, vector<29x128xf32>
    tpu.vector_store %arg16[%c0_44, %c0_45], %67 {strides = array<i32>} : memref<29x128xf32, #tpu.memory_space<vmem>>, vector<29x128xf32>,
    return
  }
  func.func @transform_0(%arg0: i32) -> (i32, i32) {
    %c0_i32 = arith.constant 0 : i32
    %c0_i32_0 = arith.constant 0 : i32
    return %c0_i32, %arg0 : i32, i32
  }
  func.func @transform_1(%arg0: i32) -> (i32, i32) {
    %c0_i32 = arith.constant 0 : i32
    %c0_i32_0 = arith.constant 0 : i32
    %c0_i32_1 = arith.constant 0 : i32
    return %c0_i32, %c0_i32_0 : i32, i32
  }
  func.func @transform_2(%arg0: i32) -> (i32, i32) {
    %c0_i32 = arith.constant 0 : i32
    %c0_i32_0 = arith.constant 0 : i32
    %c0_i32_1 = arith.constant 0 : i32
    return %c0_i32, %c0_i32_0 : i32, i32
  }
  func.func @transform_3(%arg0: i32) -> (i32, i32) {
    %c0_i32 = arith.constant 0 : i32
    %c0_i32_0 = arith.constant 0 : i32
    %c0_i32_1 = arith.constant 0 : i32
    return %c0_i32, %c0_i32_0 : i32, i32
  }
  func.func @transform_4(%arg0: i32) -> (i32, i32) {
    %c0_i32 = arith.constant 0 : i32
    %c0_i32_0 = arith.constant 0 : i32
    %c0_i32_1 = arith.constant 0 : i32
    return %c0_i32, %c0_i32_0 : i32, i32
  }
  func.func @transform_5(%arg0: i32) -> (i32, i32) {
    %c0_i32 = arith.constant 0 : i32
    %c0_i32_0 = arith.constant 0 : i32
    %c0_i32_1 = arith.constant 0 : i32
    return %c0_i32, %c0_i32_0 : i32, i32
  }
  func.func @transform_6(%arg0: i32) -> (i32, i32) {
    %c0_i32 = arith.constant 0 : i32
    %c0_i32_0 = arith.constant 0 : i32
    %c0_i32_1 = arith.constant 0 : i32
    return %c0_i32, %c0_i32_0 : i32, i32
  }
  func.func @transform_7(%arg0: i32) -> (i32, i32) {
    %c0_i32 = arith.constant 0 : i32
    %c0_i32_0 = arith.constant 0 : i32
    %c0_i32_1 = arith.constant 0 : i32
    return %c0_i32, %c0_i32_0 : i32, i32
  }
  func.func @transform_8(%arg0: i32) -> (i32, i32) {
    %c0_i32 = arith.constant 0 : i32
    %c0_i32_0 = arith.constant 0 : i32
    %c0_i32_1 = arith.constant 0 : i32
    return %c0_i32, %c0_i32_0 : i32, i32
  }
  func.func @transform_9(%arg0: i32) -> (i32, i32) {
    %c0_i32 = arith.constant 0 : i32
    %c0_i32_0 = arith.constant 0 : i32
    %c0_i32_1 = arith.constant 0 : i32
    return %c0_i32, %c0_i32_0 : i32, i32
  }
  func.func @transform_10(%arg0: i32) -> (i32, i32) {
    %c0_i32 = arith.constant 0 : i32
    %c0_i32_0 = arith.constant 0 : i32
    %c0_i32_1 = arith.constant 0 : i32
    return %c0_i32, %c0_i32_0 : i32, i32
  }
  func.func @transform_11(%arg0: i32) -> (i32, i32) {
    %c0_i32 = arith.constant 0 : i32
    %c0_i32_0 = arith.constant 0 : i32
    %c0_i32_1 = arith.constant 0 : i32
    return %c0_i32, %c0_i32_0 : i32, i32
  }
  func.func @transform_12(%arg0: i32) -> (i32, i32) {
    %c0_i32 = arith.constant 0 : i32
    %c0_i32_0 = arith.constant 0 : i32
    %c0_i32_1 = arith.constant 0 : i32
    return %c0_i32, %c0_i32_0 : i32, i32
  }
  func.func @transform_13(%arg0: i32) -> (i32, i32) {
    %c0_i32 = arith.constant 0 : i32
    %c0_i32_0 = arith.constant 0 : i32
    %c0_i32_1 = arith.constant 0 : i32
    return %c0_i32, %c0_i32_0 : i32, i32
  }
  func.func @transform_14(%arg0: i32) -> (i32, i32) {
    %c0_i32 = arith.constant 0 : i32
    %c0_i32_0 = arith.constant 0 : i32
    %c0_i32_1 = arith.constant 0 : i32
    return %c0_i32, %c0_i32_0 : i32, i32
  }
  func.func @transform_15(%arg0: i32) -> (i32, i32) {
    %c0_i32 = arith.constant 0 : i32
    %c0_i32_0 = arith.constant 0 : i32
    return %c0_i32, %arg0 : i32, i32
  }
}

</mosaic_0001>

<llo_original>
// kernel: autoencoder_forward.1
$region0: #{autoencoder_forward.1}
  #allocation0 [shape = 'u32[]', space=smem, size = 0x4, offset = 0x4, fixed_abs, tag = 'smem constant byte address 0x4 - core index']
  #allocation1 [shape = 'u32[144,128]{1,0:T(1,128)}', space=vmem, size = 0x12000, scoped, tag = 'internal scratch']
  %s0 = inlined_call_operand.vmem [shape: f32[29,256], index: 0, kind: input, shape index: {}]
  %s1 = inlined_call_operand.vmem [shape: bf16[128,29], index: 1, kind: input, shape index: {}]
  %s2 = inlined_call_operand.vmem [shape: f32[128,1], index: 2, kind: input, shape index: {}]
  %s3 = inlined_call_operand.vmem [shape: bf16[64,128], index: 3, kind: input, shape index: {}]
  %s4 = inlined_call_operand.vmem [shape: f32[64,1], index: 4, kind: input, shape index: {}]
  %s5 = inlined_call_operand.vmem [shape: bf16[12,64], index: 5, kind: input, shape index: {}]
  %s6 = inlined_call_operand.vmem [shape: f32[12,1], index: 6, kind: input, shape index: {}]
  %s7 = inlined_call_operand.vmem [shape: bf16[12,12], index: 7, kind: input, shape index: {}]
  %s8 = inlined_call_operand.vmem [shape: f32[12,1], index: 8, kind: input, shape index: {}]
  %s9 = inlined_call_operand.vmem [shape: bf16[64,12], index: 9, kind: input, shape index: {}]
  %s10 = inlined_call_operand.vmem [shape: f32[64,1], index: 10, kind: input, shape index: {}]
  %s11 = inlined_call_operand.vmem [shape: bf16[128,64], index: 11, kind: input, shape index: {}]
  %s12 = inlined_call_operand.vmem [shape: f32[128,1], index: 12, kind: input, shape index: {}]
  %s13 = inlined_call_operand.vmem [shape: bf16[29,128], index: 13, kind: input, shape index: {}]
  %s14 = inlined_call_operand.vmem [shape: f32[29,1], index: 14, kind: input, shape index: {}]
  %s15 = inlined_call_operand.hbm [shape: f32[29,256], index: 15, kind: output, shape index: {}]
  %s16 = sld [smem:[#allocation0]]
  $region131: #{autoencoder_forward.1} parent=0
    _
  %s18 = ssub.s32 1, %s16
  %s19 = scalar_select 0, %s18, %s16
  $region1: #{autoencoder_forward.1} parent=0
    #allocation2 [shape = 'u8[32768]{0}', space=vmem, size = 0x8000, scoped, tag = 'input window, operand 0']
    #allocation3 [shape = 'u8[32768]{0}', space=vmem, size = 0x8000, scoped, tag = 'output window, operand 0']
    #allocation4 [shape = 's32[2]{0}', space=sflag, size = 0x8, scoped, tag = 'scoped memory for autoencoder_forward.1']
    %20 = vsyncpa [#allocation4], 0
    %s21 = scalar_lea.sflag [#allocation4], 1
    %22 = vsyncpa %s21, 0
    loop: start=0, step=1, limit=4
    $region2: #{autoencoder_forward.1} parent=1 // loop_pre_header
      _
    $region3: #{autoencoder_forward.1} parent=1 // loop_header
      %s24 = sphi 0, %s28
      %p25 = scmp.ge.s32.totalorder %s24, 4
      %s34 = sphi 0, %s36
      %s37 = sphi 0, %s34
      %s38 = sphi 0, %s37
      %s54 = sphi 0, %s38
      %s58 = sphi 0, %s58
      %s60 = sphi 0, %s58
      %s61 = sphi 0, %s60
      %s75 = sphi 0, %s61
      %s79 = sphi 0, %s79
      %s81 = sphi 0, %s79
      %s82 = sphi 0, %s81
      %s96 = sphi 0, %s82
      %s100 = sphi 0, %s100
      %s102 = sphi 0, %s100
      %s103 = sphi 0, %s102
      %s117 = sphi 0, %s103
      %s121 = sphi 0, %s121
      %s123 = sphi 0, %s121
      %s124 = sphi 0, %s123
      %s138 = sphi 0, %s124
      %s142 = sphi 0, %s142
      %s144 = sphi 0, %s142
      %s145 = sphi 0, %s144
      %s159 = sphi 0, %s145
      %s163 = sphi 0, %s163
      %s165 = sphi 0, %s163
      %s166 = sphi 0, %s165
      %s180 = sphi 0, %s166
      %s184 = sphi 0, %s184
      %s186 = sphi 0, %s184
      %s187 = sphi 0, %s186
      %s201 = sphi 0, %s187
      %s205 = sphi 0, %s205
      %s207 = sphi 0, %s205
      %s208 = sphi 0, %s207
      %s222 = sphi 0, %s208
      %s226 = sphi 0, %s226
      %s228 = sphi 0, %s226
      %s229 = sphi 0, %s228
      %s243 = sphi 0, %s229
      %s247 = sphi 0, %s247
      %s249 = sphi 0, %s247
      %s250 = sphi 0, %s249
      %s264 = sphi 0, %s250
      %s268 = sphi 0, %s268
      %s270 = sphi 0, %s268
      %s271 = sphi 0, %s270
      %s285 = sphi 0, %s271
      %s289 = sphi 0, %s289
      %s291 = sphi 0, %s289
      %s292 = sphi 0, %s291
      %s306 = sphi 0, %s292
      %s310 = sphi 0, %s310
      %s312 = sphi 0, %s310
      %s313 = sphi 0, %s312
      %s327 = sphi 0, %s313
      %s331 = sphi 0, %s331
      %s333 = sphi 0, %s331
      %s334 = sphi 0, %s333
      %s348 = sphi 0, %s334
      %s354 = sphi 0, %s356
      %s357 = sphi 0, %s354
      %s358 = sphi 0, %s357
      %s374 = sphi 0, %s358
    $region4: #{autoencoder_forward.1} parent=1 // loop_header_branch
      %27 = sbr.rel (%p25) target = $region8
    $region5: #{autoencoder_forward.1} parent=1 // loop_body
      %s29 = ssub.s32 %s24, 1
      %s30 = ssub.s32 %s24, 2
      %s31 = sadd.s32 %s24, 1
      %s32 = ssub.s32 %s24, %s31
      %p33 = scmp.eq.s32.totalorder %s32, 0
      %s35 = sadd.s32 %s34, 1
      %s36 = scalar_select %p33, %s34, %s35
      %p39 = pneg %p33
      %p40 = scmp.eq.s32.totalorder %s24, 1
      %p41 = por %p39, %p40
      %p42 = scmp.ne.s32.totalorder %s34, %s37
      %p43 = scmp.eq.s32.totalorder %s24, 0
      %p44 = por %p42, %p43
      %p45 = scmp.ne.s32.totalorder %s34, %s37
      %p46 = scmp.eq.s32.totalorder %s29, 1
      %p47 = por %p45, %p46
      %p48 = scmp.ne.s32.totalorder %s37, %s38
      %p49 = scmp.eq.s32.totalorder %s29, 0
      %p50 = por %p48, %p49
      %p51 = scmp.ne.s32.totalorder %s37, %s38
      %p52 = scmp.eq.s32.totalorder %s30, 1
      %p53 = por %p51, %p52
      %p55 = scmp.ne.s32.totalorder %s38, %s54
      %p56 = scmp.eq.s32.totalorder %s30, 0
      %p57 = por %p55, %p56
      %s59 = sadd.s32 %s58, 1
      %p62 = scmp.eq.s32.totalorder %s24, 1
      %p63 = scmp.ne.s32.totalorder %s58, %s60
      %p64 = scmp.eq.s32.totalorder %s24, 0
      %p65 = por %p63, %p64
      %p66 = scmp.ne.s32.totalorder %s58, %s60
      %p67 = scmp.eq.s32.totalorder %s29, 1
      %p68 = por %p66, %p67
      %p69 = scmp.ne.s32.totalorder %s60, %s61
      %p70 = scmp.eq.s32.totalorder %s29, 0
      %p71 = por %p69, %p70
      %p72 = scmp.ne.s32.totalorder %s60, %s61
      %p73 = scmp.eq.s32.totalorder %s30, 1
      %p74 = por %p72, %p73
      %p76 = scmp.ne.s32.totalorder %s61, %s75
      %p77 = scmp.eq.s32.totalorder %s30, 0
      %p78 = por %p76, %p77
      %s80 = sadd.s32 %s79, 1
      %p83 = scmp.eq.s32.totalorder %s24, 1
      %p84 = scmp.ne.s32.totalorder %s79, %s81
      %p85 = scmp.eq.s32.totalorder %s24, 0
      %p86 = por %p84, %p85
      %p87 = scmp.ne.s32.totalorder %s79, %s81
      %p88 = scmp.eq.s32.totalorder %s29, 1
      %p89 = por %p87, %p88
      %p90 = scmp.ne.s32.totalorder %s81, %s82
      %p91 = scmp.eq.s32.totalorder %s29, 0
      %p92 = por %p90, %p91
      %p93 = scmp.ne.s32.totalorder %s81, %s82
      %p94 = scmp.eq.s32.totalorder %s30, 1
      %p95 = por %p93, %p94
      %p97 = scmp.ne.s32.totalorder %s82, %s96
      %p98 = scmp.eq.s32.totalorder %s30, 0
      %p99 = por %p97, %p98
      %s101 = sadd.s32 %s100, 1
      %p104 = scmp.eq.s32.totalorder %s24, 1
      %p105 = scmp.ne.s32.totalorder %s100, %s102
      %p106 = scmp.eq.s32.totalorder %s24, 0
      %p107 = por %p105, %p106
      %p108 = scmp.ne.s32.totalorder %s100, %s102
      %p109 = scmp.eq.s32.totalorder %s29, 1
      %p110 = por %p108, %p109
      %p111 = scmp.ne.s32.totalorder %s102, %s103
      %p112 = scmp.eq.s32.totalorder %s29, 0
      %p113 = por %p111, %p112
      %p114 = scmp.ne.s32.totalorder %s102, %s103
      %p115 = scmp.eq.s32.totalorder %s30, 1
      %p116 = por %p114, %p115
      %p118 = scmp.ne.s32.totalorder %s103, %s117
      %p119 = scmp.eq.s32.totalorder %s30, 0
      %p120 = por %p118, %p119
      %s122 = sadd.s32 %s121, 1
      %p125 = scmp.eq.s32.totalorder %s24, 1
      %p126 = scmp.ne.s32.totalorder %s121, %s123
      %p127 = scmp.eq.s32.totalorder %s24, 0
      %p128 = por %p126, %p127
      %p129 = scmp.ne.s32.totalorder %s121, %s123
      %p130 = scmp.eq.s32.totalorder %s29, 1
      %p131 = por %p129, %p130
      %p132 = scmp.ne.s32.totalorder %s123, %s124
      %p133 = scmp.eq.s32.totalorder %s29, 0
      %p134 = por %p132, %p133
      %p135 = scmp.ne.s32.totalorder %s123, %s124
      %p136 = scmp.eq.s32.totalorder %s30, 1
      %p137 = por %p135, %p136
      %p139 = scmp.ne.s32.totalorder %s124, %s138
      %p140 = scmp.eq.s32.totalorder %s30, 0
      %p141 = por %p139, %p140
      %s143 = sadd.s32 %s142, 1
      %p146 = scmp.eq.s32.totalorder %s24, 1
      %p147 = scmp.ne.s32.totalorder %s142, %s144
      %p148 = scmp.eq.s32.totalorder %s24, 0
      %p149 = por %p147, %p148
      %p150 = scmp.ne.s32.totalorder %s142, %s144
      %p151 = scmp.eq.s32.totalorder %s29, 1
      %p152 = por %p150, %p151
      %p153 = scmp.ne.s32.totalorder %s144, %s145
      %p154 = scmp.eq.s32.totalorder %s29, 0
      %p155 = por %p153, %p154
      %p156 = scmp.ne.s32.totalorder %s144, %s145
      %p157 = scmp.eq.s32.totalorder %s30, 1
      %p158 = por %p156, %p157
      %p160 = scmp.ne.s32.totalorder %s145, %s159
      %p161 = scmp.eq.s32.totalorder %s30, 0
      %p162 = por %p160, %p161
      %s164 = sadd.s32 %s163, 1
      %p167 = scmp.eq.s32.totalorder %s24, 1
      %p168 = scmp.ne.s32.totalorder %s163, %s165
      %p169 = scmp.eq.s32.totalorder %s24, 0
      %p170 = por %p168, %p169
      %p171 = scmp.ne.s32.totalorder %s163, %s165
      %p172 = scmp.eq.s32.totalorder %s29, 1
      %p173 = por %p171, %p172
      %p174 = scmp.ne.s32.totalorder %s165, %s166
      %p175 = scmp.eq.s32.totalorder %s29, 0
      %p176 = por %p174, %p175
      %p177 = scmp.ne.s32.totalorder %s165, %s166
      %p178 = scmp.eq.s32.totalorder %s30, 1
      %p179 = por %p177, %p178
      %p181 = scmp.ne.s32.totalorder %s166, %s180
      %p182 = scmp.eq.s32.totalorder %s30, 0
      %p183 = por %p181, %p182
      %s185 = sadd.s32 %s184, 1
      %p188 = scmp.eq.s32.totalorder %s24, 1
      %p189 = scmp.ne.s32.totalorder %s184, %s186
      %p190 = scmp.eq.s32.totalorder %s24, 0
      %p191 = por %p189, %p190
      %p192 = scmp.ne.s32.totalorder %s184, %s186
      %p193 = scmp.eq.s32.totalorder %s29, 1
      %p194 = por %p192, %p193
      %p195 = scmp.ne.s32.totalorder %s186, %s187
      %p196 = scmp.eq.s32.totalorder %s29, 0
      %p197 = por %p195, %p196
      %p198 = scmp.ne.s32.totalorder %s186, %s187
      %p199 = scmp.eq.s32.totalorder %s30, 1
      %p200 = por %p198, %p199
      %p202 = scmp.ne.s32.totalorder %s187, %s201
      %p203 = scmp.eq.s32.totalorder %s30, 0
      %p204 = por %p202, %p203
      %s206 = sadd.s32 %s205, 1
      %p209 = scmp.eq.s32.totalorder %s24, 1
      %p210 = scmp.ne.s32.totalorder %s205, %s207
      %p211 = scmp.eq.s32.totalorder %s24, 0
      %p212 = por %p210, %p211
      %p213 = scmp.ne.s32.totalorder %s205, %s207
      %p214 = scmp.eq.s32.totalorder %s29, 1
      %p215 = por %p213, %p214
      %p216 = scmp.ne.s32.totalorder %s207, %s208
      %p217 = scmp.eq.s32.totalorder %s29, 0
      %p218 = por %p216, %p217
      %p219 = scmp.ne.s32.totalorder %s207, %s208
      %p220 = scmp.eq.s32.totalorder %s30, 1
      %p221 = por %p219, %p220
      %p223 = scmp.ne.s32.totalorder %s208, %s222
      %p224 = scmp.eq.s32.totalorder %s30, 0
      %p225 = por %p223, %p224
      %s227 = sadd.s32 %s226, 1
      %p230 = scmp.eq.s32.totalorder %s24, 1
      %p231 = scmp.ne.s32.totalorder %s226, %s228
      %p232 = scmp.eq.s32.totalorder %s24, 0
      %p233 = por %p231, %p232
      %p234 = scmp.ne.s32.totalorder %s226, %s228
      %p235 = scmp.eq.s32.totalorder %s29, 1
      %p236 = por %p234, %p235
      %p237 = scmp.ne.s32.totalorder %s228, %s229
      %p238 = scmp.eq.s32.totalorder %s29, 0
      %p239 = por %p237, %p238
      %p240 = scmp.ne.s32.totalorder %s228, %s229
      %p241 = scmp.eq.s32.totalorder %s30, 1
      %p242 = por %p240, %p241
      %p244 = scmp.ne.s32.totalorder %s229, %s243
      %p245 = scmp.eq.s32.totalorder %s30, 0
      %p246 = por %p244, %p245
      %s248 = sadd.s32 %s247, 1
      %p251 = scmp.eq.s32.totalorder %s24, 1
      %p252 = scmp.ne.s32.totalorder %s247, %s249
      %p253 = scmp.eq.s32.totalorder %s24, 0
      %p254 = por %p252, %p253
      %p255 = scmp.ne.s32.totalorder %s247, %s249
      %p256 = scmp.eq.s32.totalorder %s29, 1
      %p257 = por %p255, %p256
      %p258 = scmp.ne.s32.totalorder %s249, %s250
      %p259 = scmp.eq.s32.totalorder %s29, 0
      %p260 = por %p258, %p259
      %p261 = scmp.ne.s32.totalorder %s249, %s250
      %p262 = scmp.eq.s32.totalorder %s30, 1
      %p263 = por %p261, %p262
      %p265 = scmp.ne.s32.totalorder %s250, %s264
      %p266 = scmp.eq.s32.totalorder %s30, 0
      %p267 = por %p265, %p266
      %s269 = sadd.s32 %s268, 1
      %p272 = scmp.eq.s32.totalorder %s24, 1
      %p273 = scmp.ne.s32.totalorder %s268, %s270
      %p274 = scmp.eq.s32.totalorder %s24, 0
      %p275 = por %p273, %p274
      %p276 = scmp.ne.s32.totalorder %s268, %s270
      %p277 = scmp.eq.s32.totalorder %s29, 1
      %p278 = por %p276, %p277
      %p279 = scmp.ne.s32.totalorder %s270, %s271
      %p280 = scmp.eq.s32.totalorder %s29, 0
      %p281 = por %p279, %p280
      %p282 = scmp.ne.s32.totalorder %s270, %s271
      %p283 = scmp.eq.s32.totalorder %s30, 1
      %p284 = por %p282, %p283
      %p286 = scmp.ne.s32.totalorder %s271, %s285
      %p287 = scmp.eq.s32.totalorder %s30, 0
      %p288 = por %p286, %p287
      %s290 = sadd.s32 %s289, 1
      %p293 = scmp.eq.s32.totalorder %s24, 1
      %p294 = scmp.ne.s32.totalorder %s289, %s291
      %p295 = scmp.eq.s32.totalorder %s24, 0
      %p296 = por %p294, %p295
      %p297 = scmp.ne.s32.totalorder %s289, %s291
      %p298 = scmp.eq.s32.totalorder %s29, 1
      %p299 = por %p297, %p298
      %p300 = scmp.ne.s32.totalorder %s291, %s292
      %p301 = scmp.eq.s32.totalorder %s29, 0
      %p302 = por %p300, %p301
      %p303 = scmp.ne.s32.totalorder %s291, %s292
      %p304 = scmp.eq.s32.totalorder %s30, 1
      %p305 = por %p303, %p304
      %p307 = scmp.ne.s32.totalorder %s292, %s306
      %p308 = scmp.eq.s32.totalorder %s30, 0
      %p309 = por %p307, %p308
      %s311 = sadd.s32 %s310, 1
      %p314 = scmp.eq.s32.totalorder %s24, 1
      %p315 = scmp.ne.s32.totalorder %s310, %s312
      %p316 = scmp.eq.s32.totalorder %s24, 0
      %p317 = por %p315, %p316
      %p318 = scmp.ne.s32.totalorder %s310, %s312
      %p319 = scmp.eq.s32.totalorder %s29, 1
      %p320 = por %p318, %p319
      %p321 = scmp.ne.s32.totalorder %s312, %s313
      %p322 = scmp.eq.s32.totalorder %s29, 0
      %p323 = por %p321, %p322
      %p324 = scmp.ne.s32.totalorder %s312, %s313
      %p325 = scmp.eq.s32.totalorder %s30, 1
      %p326 = por %p324, %p325
      %p328 = scmp.ne.s32.totalorder %s313, %s327
      %p329 = scmp.eq.s32.totalorder %s30, 0
      %p330 = por %p328, %p329
      %s332 = sadd.s32 %s331, 1
      %p335 = scmp.eq.s32.totalorder %s24, 1
      %p336 = scmp.ne.s32.totalorder %s331, %s333
      %p337 = scmp.eq.s32.totalorder %s24, 0
      %p338 = por %p336, %p337
      %p339 = scmp.ne.s32.totalorder %s331, %s333
      %p340 = scmp.eq.s32.totalorder %s29, 1
      %p341 = por %p339, %p340
      %p342 = scmp.ne.s32.totalorder %s333, %s334
      %p343 = scmp.eq.s32.totalorder %s29, 0
      %p344 = por %p342, %p343
      %p345 = scmp.ne.s32.totalorder %s333, %s334
      %p346 = scmp.eq.s32.totalorder %s30, 1
      %p347 = por %p345, %p346
      %p349 = scmp.ne.s32.totalorder %s334, %s348
      %p350 = scmp.eq.s32.totalorder %s30, 0
      %p351 = por %p349, %p350
      %s352 = ssub.s32 %s24, %s31
      %p353 = scmp.eq.s32.totalorder %s352, 0
      %s355 = sadd.s32 %s354, 1
      %s356 = scalar_select %p353, %s354, %s355
      %p359 = pneg %p353
      %p360 = scmp.eq.s32.totalorder %s24, 1
      %p361 = por %p359, %p360
      %p362 = scmp.ne.s32.totalorder %s354, %s357
      %p363 = scmp.eq.s32.totalorder %s24, 0
      %p364 = por %p362, %p363
      %p365 = scmp.ne.s32.totalorder %s354, %s357
      %p366 = scmp.eq.s32.totalorder %s29, 1
      %p367 = por %p365, %p366
      %p368 = scmp.ne.s32.totalorder %s357, %s358
      %p369 = scmp.eq.s32.totalorder %s29, 0
      %p370 = por %p368, %p369
      %p371 = scmp.ne.s32.totalorder %s357, %s358
      %p372 = scmp.eq.s32.totalorder %s30, 1
      %p373 = por %p371, %p372
      %p375 = scmp.ne.s32.totalorder %s358, %s374
      %p376 = scmp.eq.s32.totalorder %s30, 0
      %p377 = por %p375, %p376
      %p378 = scmp.le.s32.totalorder 1, %s24
      %p379 = scmp.lt.s32.totalorder %s24, 3
      %p380 = pnand %p378, %p379
      %p381 = pneg %p380
      // Predicated region
      $region9: #{autoencoder_forward.1} parent=5 // pred_check
        _
      $region10: #{autoencoder_forward.1} parent=5 // pred_check_branch
        %383 = sbr.rel (%p380) target = $region12
      $region11: #{autoencoder_forward.1} parent=5 // pred_region
        %s384 = ssub.s32 %s24, 1
        // Predicated region
        $region13: #{autoencoder_forward.1} parent=11 // pred_check
          %p385 = pneg %p71
        $region14: #{autoencoder_forward.1} parent=11 // pred_check_branch
          %387 = sbr.rel (%p385) target = $region16
        $region15: #{autoencoder_forward.1} parent=11 // pred_region
          _
        $region16: #{autoencoder_forward.1} parent=11 // pred_fallthru
          _
        // Predicated region
        $region17: #{autoencoder_forward.1} parent=11 // pred_check
          %p388 = pneg %p92
        $region18: #{autoencoder_forward.1} parent=11 // pred_check_branch
          %390 = sbr.rel (%p388) target = $region20
        $region19: #{autoencoder_forward.1} parent=11 // pred_region
          _
        $region20: #{autoencoder_forward.1} parent=11 // pred_fallthru
          _
        // Predicated region
        $region21: #{autoencoder_forward.1} parent=11 // pred_check
          %p391 = pneg %p113
        $region22: #{autoencoder_forward.1} parent=11 // pred_check_branch
          %393 = sbr.rel (%p391) target = $region24
        $region23: #{autoencoder_forward.1} parent=11 // pred_region
          _
        $region24: #{autoencoder_forward.1} parent=11 // pred_fallthru
          _
        // Predicated region
        $region25: #{autoencoder_forward.1} parent=11 // pred_check
          %p394 = pneg %p134
        $region26: #{autoencoder_forward.1} parent=11 // pred_check_branch
          %396 = sbr.rel (%p394) target = $region28
        $region27: #{autoencoder_forward.1} parent=11 // pred_region
          _
        $region28: #{autoencoder_forward.1} parent=11 // pred_fallthru
          _
        // Predicated region
        $region29: #{autoencoder_forward.1} parent=11 // pred_check
          %p397 = pneg %p155
        $region30: #{autoencoder_forward.1} parent=11 // pred_check_branch
          %399 = sbr.rel (%p397) target = $region32
        $region31: #{autoencoder_forward.1} parent=11 // pred_region
          _
        $region32: #{autoencoder_forward.1} parent=11 // pred_fallthru
          _
        // Predicated region
        $region33: #{autoencoder_forward.1} parent=11 // pred_check
          %p400 = pneg %p176
        $region34: #{autoencoder_forward.1} parent=11 // pred_check_branch
          %402 = sbr.rel (%p400) target = $region36
        $region35: #{autoencoder_forward.1} parent=11 // pred_region
          _
        $region36: #{autoencoder_forward.1} parent=11 // pred_fallthru
          _
        // Predicated region
        $region37: #{autoencoder_forward.1} parent=11 // pred_check
          %p403 = pneg %p197
        $region38: #{autoencoder_forward.1} parent=11 // pred_check_branch
          %405 = sbr.rel (%p403) target = $region40
        $region39: #{autoencoder_forward.1} parent=11 // pred_region
          _
        $region40: #{autoencoder_forward.1} parent=11 // pred_fallthru
          _
        // Predicated region
        $region41: #{autoencoder_forward.1} parent=11 // pred_check
          %p406 = pneg %p218
        $region42: #{autoencoder_forward.1} parent=11 // pred_check_branch
          %408 = sbr.rel (%p406) target = $region44
        $region43: #{autoencoder_forward.1} parent=11 // pred_region
          _
        $region44: #{autoencoder_forward.1} parent=11 // pred_fallthru
          _
        // Predicated region
        $region45: #{autoencoder_forward.1} parent=11 // pred_check
          %p409 = pneg %p239
        $region46: #{autoencoder_forward.1} parent=11 // pred_check_branch
          %411 = sbr.rel (%p409) target = $region48
        $region47: #{autoencoder_forward.1} parent=11 // pred_region
          _
        $region48: #{autoencoder_forward.1} parent=11 // pred_fallthru
          _
        // Predicated region
        $region49: #{autoencoder_forward.1} parent=11 // pred_check
          %p412 = pneg %p260
        $region50: #{autoencoder_forward.1} parent=11 // pred_check_branch
          %414 = sbr.rel (%p412) target = $region52
        $region51: #{autoencoder_forward.1} parent=11 // pred_region
          _
        $region52: #{autoencoder_forward.1} parent=11 // pred_fallthru
          _
        // Predicated region
        $region53: #{autoencoder_forward.1} parent=11 // pred_check
          %p415 = pneg %p281
        $region54: #{autoencoder_forward.1} parent=11 // pred_check_branch
          %417 = sbr.rel (%p415) target = $region56
        $region55: #{autoencoder_forward.1} parent=11 // pred_region
          _
        $region56: #{autoencoder_forward.1} parent=11 // pred_fallthru
          _
        // Predicated region
        $region57: #{autoencoder_forward.1} parent=11 // pred_check
          %p418 = pneg %p302
        $region58: #{autoencoder_forward.1} parent=11 // pred_check_branch
          %420 = sbr.rel (%p418) target = $region60
        $region59: #{autoencoder_forward.1} parent=11 // pred_region
          _
        $region60: #{autoencoder_forward.1} parent=11 // pred_fallthru
          _
        // Predicated region
        $region61: #{autoencoder_forward.1} parent=11 // pred_check
          %p421 = pneg %p323
        $region62: #{autoencoder_forward.1} parent=11 // pred_check_branch
          %423 = sbr.rel (%p421) target = $region64
        $region63: #{autoencoder_forward.1} parent=11 // pred_region
          _
        $region64: #{autoencoder_forward.1} parent=11 // pred_fallthru
          _
        // Predicated region
        $region65: #{autoencoder_forward.1} parent=11 // pred_check
          %p424 = pneg %p344
        $region66: #{autoencoder_forward.1} parent=11 // pred_check_branch
          %426 = sbr.rel (%p424) target = $region68
        $region67: #{autoencoder_forward.1} parent=11 // pred_region
          _
        $region68: #{autoencoder_forward.1} parent=11 // pred_fallthru
          _
      $region12: #{autoencoder_forward.1} parent=5 // pred_fallthru
        _
      %p427 = scmp.lt.s32.totalorder %s24, 2
      // Predicated region
      $region69: #{autoencoder_forward.1} parent=5 // pred_check
        %p428 = pneg %p427
      $region70: #{autoencoder_forward.1} parent=5 // pred_check_branch
        %430 = sbr.rel (%p428) target = $region72
      $region71: #{autoencoder_forward.1} parent=5 // pred_region
        // Predicated region
        $region73: #{autoencoder_forward.1} parent=71 // pred_check
          %p431 = pneg %p44
        $region74: #{autoencoder_forward.1} parent=71 // pred_check_branch
          %433 = sbr.rel (%p431) target = $region76
        $region75: #{autoencoder_forward.1} parent=71 // pred_region
          %s434 = sand.u32 %s34, 1
          %s435 = sand.u32 %s34, 1
          %s436 = smul.addr %s435, 32
          %s437 = scalar_lea.vmem [#allocation2], %s436
          %s438 = smul.addr %s24, 8
          %s439 = scalar_lea.vmem %s0, %s438
          // Predicated region
          $region77: #{autoencoder_forward.1} parent=75 // pred_check
            _
          $region78: #{autoencoder_forward.1} parent=75 // pred_check_branch
            %441 = sbr.rel (0) target = $region80
          $region79: #{autoencoder_forward.1} parent=75 // pred_region
            // Predicated region
            $region81: #{autoencoder_forward.1} parent=79 // pred_check
              _
            $region82: #{autoencoder_forward.1} parent=79 // pred_check_branch
              %443 = sbr.rel (0) target = $region84
            $region83: #{autoencoder_forward.1} parent=79 // pred_region
              // Predicated region
              $region96: #{autoencoder_forward.1} parent=83 // pred_check
                _
              $region97: #{autoencoder_forward.1} parent=83 // pred_check_branch
                %464 = sbr.rel (0) target = $region99
              $region98: #{autoencoder_forward.1} parent=83 // pred_region
                loop: start=0, step=1, limit=1
                $region100: #{autoencoder_forward.1} parent=98 // loop_pre_header
                  _
                $region101: #{autoencoder_forward.1} parent=98 // loop_header
                  %s466 = sphi 0, %s470
                  %p467 = scmp.ge.s32.totalorder %s466, 1
                  %s471 = sphi %s439, %s439
                  %s472 = sphi %s437, %s437
                $region102: #{autoencoder_forward.1} parent=98 // loop_header_branch
                  %469 = sbr.rel (%p467) target = $region106
                $region103: #{autoencoder_forward.1} parent=98 // loop_body
                  %v473 = vld [vmem:[%s471] sm:$0xff]
                  %474 = vst [vmem:[%s472] sm:$0xff] %v473
                  %v475 = vld [vmem:[%s471 + $0x10] sm:$0xff]
                  %476 = vst [vmem:[%s472 + $0x8] sm:$0xff] %v475
                  %v477 = vld [vmem:[%s471 + $0x20] sm:$0xff]
                  %478 = vst [vmem:[%s472 + $0x10] sm:$0xff] %v477
                  %v479 = vld [vmem:[%s471 + $0x30] sm:$0xff]
                  %480 = vst [vmem:[%s472 + $0x18] sm:$0xff] %v479
                $region104: #{autoencoder_forward.1} parent=98 // loop_footer
                  %s470 = sadd.s32 1, %s466
                $region105: #{autoencoder_forward.1} parent=98 // loop_footer_branch
                  %465 = sbr.rel target = $region101
                $region106: #{autoencoder_forward.1} parent=98 // loop_exit
                  _
              $region99: #{autoencoder_forward.1} parent=83 // pred_fallthru
                _
              // Predicated region
              $region107: #{autoencoder_forward.1} parent=83 // pred_check
                _
              $region108: #{autoencoder_forward.1} parent=83 // pred_check_branch
                %482 = sbr.rel target = $region110
              $region109: #{autoencoder_forward.1} parent=83 // pred_region
                _
              $region110: #{autoencoder_forward.1} parent=83 // pred_fallthru
                _
            $region84: #{autoencoder_forward.1} parent=79 // pred_fallthru
              _
            // Predicated region
            $region85: #{autoencoder_forward.1} parent=79 // pred_check
              _
            $region86: #{autoencoder_forward.1} parent=79 // pred_check_branch
              %445 = sbr.rel target = $region88
            $region87: #{autoencoder_forward.1} parent=79 // pred_region
              loop: start=0, step=1, limit=1
              $region89: #{autoencoder_forward.1} parent=87 // loop_pre_header
                _
              $region90: #{autoencoder_forward.1} parent=87 // loop_header
                %s448 = sphi 0, %s452
                %p449 = scmp.ge.s32.totalorder %s448, 1
                %s453 = sphi %s439, %s439
                %s454 = sphi %s437, %s437
              $region91: #{autoencoder_forward.1} parent=87 // loop_header_branch
                %451 = sbr.rel (%p449) target = $region95
              $region92: #{autoencoder_forward.1} parent=87 // loop_body
                %v455 = vld [vmem:[%s453] sm:$0xff]
                %456 = vst [vmem:[%s454] sm:$0xff] %v455
                %v457 = vld [vmem:[%s453 + $0x10] sm:$0xff]
                %458 = vst [vmem:[%s454 + $0x8] sm:$0xff] %v457
                %v459 = vld [vmem:[%s453 + $0x20] sm:$0xff]
                %460 = vst [vmem:[%s454 + $0x10] sm:$0xff] %v459
                %v461 = vld [vmem:[%s453 + $0x30] sm:$0xff]
                %462 = vst [vmem:[%s454 + $0x18] sm:$0xff] %v461
              $region93: #{autoencoder_forward.1} parent=87 // loop_footer
                %s452 = sadd.s32 1, %s448
              $region94: #{autoencoder_forward.1} parent=87 // loop_footer_branch
                %447 = sbr.rel target = $region90
              $region95: #{autoencoder_forward.1} parent=87 // loop_exit
                _
            $region88: #{autoencoder_forward.1} parent=79 // pred_fallthru
              _
          $region80: #{autoencoder_forward.1} parent=75 // pred_fallthru
            _
          %483 = vnop
        $region76: #{autoencoder_forward.1} parent=71 // pred_fallthru
          _
      $region72: #{autoencoder_forward.1} parent=5 // pred_fallthru
        _
      %p484 = scmp.le.s32.totalorder 1, %s24
      %p485 = scmp.lt.s32.totalorder %s24, 3
      %p486 = pnand %p484, %p485
      %p487 = pneg %p486
      // Predicated region
      $region111: #{autoencoder_forward.1} parent=5 // pred_check
        _
      $region112: #{autoencoder_forward.1} parent=5 // pred_check_branch
        %489 = sbr.rel (%p486) target = $region114
      $region113: #{autoencoder_forward.1} parent=5 // pred_region
        %s490 = ssub.s32 %s24, 1
        %s491 = sand.u32 %s37, 1
        %s492 = sand.u32 %s37, 1
        %s493 = smul.addr %s492, 32
        %s494 = scalar_lea.vmem [#allocation2], %s493
        // Predicated region
        $region115: #{autoencoder_forward.1} parent=113 // pred_check
          %p495 = pneg %p50
        $region116: #{autoencoder_forward.1} parent=113 // pred_check_branch
          %497 = sbr.rel (%p495) target = $region118
        $region117: #{autoencoder_forward.1} parent=113 // pred_region
          _
        $region118: #{autoencoder_forward.1} parent=113 // pred_fallthru
          _
        %s498 = sand.u32 %s37, 1
        %s499 = sand.u32 %s37, 1
        %s500 = smul.addr %s499, 32
        %s501 = scalar_lea.vmem [#allocation2], %s500
        %p502 = pneg %p50
        %p503 = pneg %p47
        %p504 = pneg %p71
        %p505 = pneg %p68
        %p506 = pneg %p92
        %p507 = pneg %p89
        %p508 = pneg %p113
        %p509 = pneg %p110
        %p510 = pneg %p134
        %p511 = pneg %p131
        %p512 = pneg %p155
        %p513 = pneg %p152
        %p514 = pneg %p176
        %p515 = pneg %p173
        %p516 = pneg %p197
        %p517 = pneg %p194
        %p518 = pneg %p218
        %p519 = pneg %p215
        %p520 = pneg %p239
        %p521 = pneg %p236
        %p522 = pneg %p260
        %p523 = pneg %p257
        %p524 = pneg %p281
        %p525 = pneg %p278
        %p526 = pneg %p302
        %p527 = pneg %p299
        %p528 = pneg %p323
        %p529 = pneg %p320
        %p530 = pneg %p344
        %p531 = pneg %p341
        %p532 = pneg %p370
        %p533 = pneg %p367
        %s534 = sand.u32 %s357, 1
        %s535 = scalar_lea.sflag [#allocation4], %s534
        %s536 = sand.u32 %s357, 1
        %s537 = smul.addr %s536, 32
        %s538 = scalar_lea.vmem [#allocation3], %s537
        %v540 = vld [vmem:[%s494] sm:$0xff]
        %v541 = vld [vmem:[%s494 + $0x8] sm:$0xff]
        %v542 = vld [vmem:[%s494 + $0x10] sm:$0xff]
        %v543 = vld [vmem:[%s494 + $0x18] sm:$0x1f]
        %v544 = vpack.c.bf16 %v541, %v540
        %v545 = vpack.c.bf16 %v543, %v542
        %v546 = vld [vmem:[%s1] sm:$0xf]
        %v547 = vld [vmem:[%s1 + $0x4] sm:$0xf]
        %v548 = vld [vmem:[%s1 + $0x8] sm:$0xf]
        %v549 = vld [vmem:[%s1 + $0xc] sm:$0xf]
        %v550 = vld [vmem:[%s1 + $0x10] sm:$0xf]
        %v551 = vld [vmem:[%s1 + $0x14] sm:$0xf]
        %v552 = vld [vmem:[%s1 + $0x18] sm:$0xf]
        %v553 = vld [vmem:[%s1 + $0x1c] sm:$0xf]
        %v554 = vld [vmem:[%s1 + $0x20] sm:$0xf]
        %v555 = vld [vmem:[%s1 + $0x24] sm:$0xf]
        %v556 = vld [vmem:[%s1 + $0x28] sm:$0xf]
        %v557 = vld [vmem:[%s1 + $0x2c] sm:$0xf]
        %v558 = vld [vmem:[%s1 + $0x30] sm:$0xf]
        %v559 = vld [vmem:[%s1 + $0x34] sm:$0xf]
        %v560 = vld [vmem:[%s1 + $0x38] sm:$0xf]
        %v561 = vld [vmem:[%s1 + $0x3c] sm:$0xf]
        %v562 = vld [vmem:[%s2] sm:$0xff]
        %v563 = vld [vmem:[%s2 + $0x8] sm:$0xff]
        %v564 = vld [vmem:[%s2 + $0x10] sm:$0xff]
        %v565 = vld [vmem:[%s2 + $0x18] sm:$0xff]
        %v566 = vld [vmem:[%s2 + $0x20] sm:$0xff]
        %v567 = vld [vmem:[%s2 + $0x28] sm:$0xff]
        %v568 = vld [vmem:[%s2 + $0x30] sm:$0xff]
        %v569 = vld [vmem:[%s2 + $0x38] sm:$0xff]
        %v570 = vld [vmem:[%s2 + $0x40] sm:$0xff]
        %v571 = vld [vmem:[%s2 + $0x48] sm:$0xff]
        %v572 = vld [vmem:[%s2 + $0x50] sm:$0xff]
        %v573 = vld [vmem:[%s2 + $0x58] sm:$0xff]
        %v574 = vld [vmem:[%s2 + $0x60] sm:$0xff]
        %v575 = vld [vmem:[%s2 + $0x68] sm:$0xff]
        %v576 = vld [vmem:[%s2 + $0x70] sm:$0xff]
        %v577 = vld [vmem:[%s2 + $0x78] sm:$0xff]
        %579 = vset.pattern.permute.xlu0 0
        %580 = vperm.xlu0 %579, %v562
        %v581 = vpop.permute.xlu0 %580
        %584 = vset.pattern.permute.xlu0 0
        %585 = vperm.xlu0 %584, %v563
        %v586 = vpop.permute.xlu0 %585
        %589 = vset.pattern.permute.xlu0 0
        %590 = vperm.xlu0 %589, %v564
        %v591 = vpop.permute.xlu0 %590
        %594 = vset.pattern.permute.xlu0 0
        %595 = vperm.xlu0 %594, %v565
        %v596 = vpop.permute.xlu0 %595
        %599 = vset.pattern.permute.xlu0 0
        %600 = vperm.xlu0 %599, %v566
        %v601 = vpop.permute.xlu0 %600
        %604 = vset.pattern.permute.xlu0 0
        %605 = vperm.xlu0 %604, %v567
        %v606 = vpop.permute.xlu0 %605
        %609 = vset.pattern.permute.xlu0 0
        %610 = vperm.xlu0 %609, %v568
        %v611 = vpop.permute.xlu0 %610
        %614 = vset.pattern.permute.xlu0 0
        %615 = vperm.xlu0 %614, %v569
        %v616 = vpop.permute.xlu0 %615
        %619 = vset.pattern.permute.xlu0 0
        %620 = vperm.xlu0 %619, %v570
        %v621 = vpop.permute.xlu0 %620
        %624 = vset.pattern.permute.xlu0 0
        %625 = vperm.xlu0 %624, %v571
        %v626 = vpop.permute.xlu0 %625
        %629 = vset.pattern.permute.xlu0 0
        %630 = vperm.xlu0 %629, %v572
        %v631 = vpop.permute.xlu0 %630
        %634 = vset.pattern.permute.xlu0 0
        %635 = vperm.xlu0 %634, %v573
        %v636 = vpop.permute.xlu0 %635
        %639 = vset.pattern.permute.xlu0 0
        %640 = vperm.xlu0 %639, %v574
        %v641 = vpop.permute.xlu0 %640
        %644 = vset.pattern.permute.xlu0 0
        %645 = vperm.xlu0 %644, %v575
        %v646 = vpop.permute.xlu0 %645
        %649 = vset.pattern.permute.xlu0 0
        %650 = vperm.xlu0 %649, %v576
        %v651 = vpop.permute.xlu0 %650
        %654 = vset.pattern.permute.xlu0 0
        %655 = vperm.xlu0 %654, %v577
        %v656 = vpop.permute.xlu0 %655
        %v674 = vunpack.c.l.b16 %v546
        %v675 = vunpack.c.l.b16 %v547
        %v676 = vunpack.c.l.b16 %v548
        %v677 = vunpack.c.l.b16 %v549
        %v678 = vunpack.c.l.b16 %v550
        %v679 = vunpack.c.l.b16 %v551
        %v680 = vunpack.c.l.b16 %v552
        %v681 = vunpack.c.l.b16 %v553
        %v682 = vunpack.c.l.b16 %v554
        %v683 = vunpack.c.l.b16 %v555
        %v684 = vunpack.c.l.b16 %v556
        %v685 = vunpack.c.l.b16 %v557
        %v686 = vunpack.c.l.b16 %v558
        %v687 = vunpack.c.l.b16 %v559
        %v688 = vunpack.c.l.b16 %v560
        %v689 = vunpack.c.l.b16 %v561
        %v690 = vpack.c.b16 %v675, %v674
        %v691 = vpack.c.b16 %v677, %v676
        %v692 = vpack.c.b16 %v679, %v678
        %v693 = vpack.c.b16 %v681, %v680
        %v694 = vpack.c.b16 %v683, %v682
        %v695 = vpack.c.b16 %v685, %v684
        %v696 = vpack.c.b16 %v687, %v686
        %v697 = vpack.c.b16 %v689, %v688
        %vm698 = vcmask 236544
        %v700 = vsel %vm698, %v690, 0
        %v703 = vsel %vm698, %v691, 0
        %v706 = vsel %vm698, %v692, 0
        %v709 = vsel %vm698, %v693, 0
        %v712 = vsel %vm698, %v694, 0
        %v715 = vsel %vm698, %v695, 0
        %v718 = vsel %vm698, %v696, 0
        %v721 = vsel %vm698, %v697, 0
        %vm723 = vcmask 1045504
        %vm724 = vcmask 1046528
        %v725 = vsel %vm723, 4294967295, 65535
        %v726 = vsel %vm724, %v725, 0
        %v728 = vand.u32 %v545, %v726
        %730 = vmatprep.subr.bf16.mxu0 0
        %731 = vmatpush1.bf16.msra.mxu0 %v544
        %732 = vmatprep.subr.bf16.mxu0 0
        %733 = vmatpush1.bf16.msra.mxu0 %v728
        %734 = vmatprep.subr.bf16.mxu0 0
        %735 = vmatpush1.bf16.msra.mxu0 0
        %736 = vmatprep.subr.bf16.mxu0 0
        %737 = vmatpush1.bf16.msra.mxu0 0
        %738 = vmatprep.subr.bf16.mxu0 0
        %739 = vmatpush1.bf16.msra.mxu0 0
        %740 = vmatprep.subr.bf16.mxu0 0
        %741 = vmatpush1.bf16.msra.mxu0 0
        %742 = vmatprep.subr.bf16.mxu0 0
        %743 = vmatpush1.bf16.msra.mxu0 0
        %744 = vmatprep.subr.bf16.mxu0 0
        %745 = vmatpush1.bf16.msra.mxu0 0
        %746 = vmatprep.subr.bf16.mxu0 0
        %747 = vmatpush1.bf16.msra.mxu0 0
        %748 = vmatprep.subr.bf16.mxu0 0
        %749 = vmatpush1.bf16.msra.mxu0 0
        %750 = vmatprep.subr.bf16.mxu0 0
        %751 = vmatpush1.bf16.msra.mxu0 0
        %752 = vmatprep.subr.bf16.mxu0 0
        %753 = vmatpush1.bf16.msra.mxu0 0
        %754 = vmatprep.subr.bf16.mxu0 0
        %755 = vmatpush1.bf16.msra.mxu0 0
        %756 = vmatprep.subr.bf16.mxu0 0
        %757 = vmatpush1.bf16.msra.mxu0 0
        %758 = vmatprep.subr.bf16.mxu0 0
        %759 = vmatpush1.bf16.msra.mxu0 0
        %760 = vmatprep.subr.bf16.mxu0 0
        %761 = vmatpush1.bf16.msra.mxu0 0
        %762 = vmatprep.mubr.bf16.mxu0 0
        %763 = vmatmul.mubr.bf16.gmra.mrb[0].mxu0 %v700
        %v764 = vpop.f32.mrb[0].mxu0
        %v765 = vadd.f32 %v581, %v764
        %v766 = vpop.f32.mrb[0].mxu0
        %v767 = vpop.f32.mrb[0].mxu0
        %v768 = vadd.f32 %v586, %v767
        %v769 = vpop.f32.mrb[0].mxu0
        %770 = vmatprep.mubr.bf16.mxu0 0
        %771 = vmatmul.mubr.bf16.gmra.mrb[0].mxu0 %v703
        %v772 = vpop.f32.mrb[0].mxu0
        %v773 = vadd.f32 %v591, %v772
        %v774 = vpop.f32.mrb[0].mxu0
        %v775 = vpop.f32.mrb[0].mxu0
        %v776 = vadd.f32 %v596, %v775
        %v777 = vpop.f32.mrb[0].mxu0
        %778 = vmatprep.mubr.bf16.mxu0 0
        %779 = vmatmul.mubr.bf16.gmra.mrb[0].mxu0 %v706
        %v780 = vpop.f32.mrb[0].mxu0
        %v781 = vadd.f32 %v601, %v780
        %v782 = vpop.f32.mrb[0].mxu0
        %v783 = vpop.f32.mrb[0].mxu0
        %v784 = vadd.f32 %v606, %v783
        %v785 = vpop.f32.mrb[0].mxu0
        %786 = vmatprep.mubr.bf16.mxu0 0
        %787 = vmatmul.mubr.bf16.gmra.mrb[0].mxu0 %v709
        %v788 = vpop.f32.mrb[0].mxu0
        %v789 = vadd.f32 %v611, %v788
        %v790 = vpop.f32.mrb[0].mxu0
        %v791 = vpop.f32.mrb[0].mxu0
        %v792 = vadd.f32 %v616, %v791
        %v793 = vpop.f32.mrb[0].mxu0
        %794 = vmatprep.mubr.bf16.mxu0 0
        %795 = vmatmul.mubr.bf16.gmra.mrb[0].mxu0 %v712
        %v796 = vpop.f32.mrb[0].mxu0
        %v797 = vadd.f32 %v621, %v796
        %v798 = vpop.f32.mrb[0].mxu0
        %v799 = vpop.f32.mrb[0].mxu0
        %v800 = vadd.f32 %v626, %v799
        %v801 = vpop.f32.mrb[0].mxu0
        %802 = vmatprep.mubr.bf16.mxu0 0
        %803 = vmatmul.mubr.bf16.gmra.mrb[0].mxu0 %v715
        %v804 = vpop.f32.mrb[0].mxu0
        %v805 = vadd.f32 %v631, %v804
        %v806 = vpop.f32.mrb[0].mxu0
        %v807 = vpop.f32.mrb[0].mxu0
        %v808 = vadd.f32 %v636, %v807
        %v809 = vpop.f32.mrb[0].mxu0
        %810 = vmatprep.mubr.bf16.mxu0 0
        %811 = vmatmul.mubr.bf16.gmra.mrb[0].mxu0 %v718
        %v812 = vpop.f32.mrb[0].mxu0
        %v813 = vadd.f32 %v641, %v812
        %v814 = vpop.f32.mrb[0].mxu0
        %v815 = vpop.f32.mrb[0].mxu0
        %v816 = vadd.f32 %v646, %v815
        %v817 = vpop.f32.mrb[0].mxu0
        %818 = vmatprep.mubr.bf16.mxu0 0
        %819 = vmatmul.mubr.bf16.gmra.mrb[0].mxu0 %v721
        %v820 = vpop.f32.mrb[0].mxu0
        %v821 = vadd.f32 %v651, %v820
        %v822 = vpop.f32.mrb[0].mxu0
        %v823 = vpop.f32.mrb[0].mxu0
        %v824 = vadd.f32 %v656, %v823
        %v825 = vpop.f32.mrb[0].mxu0
        %826 = vdwg.mxu0
        %v827 = vmax.f32 %v765, 0.0
        %v828 = vmax.f32 %v768, 0.0
        %v829 = vmax.f32 %v773, 0.0
        %v830 = vmax.f32 %v776, 0.0
        %v831 = vmax.f32 %v781, 0.0
        %v832 = vmax.f32 %v784, 0.0
        %v833 = vmax.f32 %v789, 0.0
        %v834 = vmax.f32 %v792, 0.0
        %v835 = vmax.f32 %v797, 0.0
        %v836 = vmax.f32 %v800, 0.0
        %v837 = vmax.f32 %v805, 0.0
        %v838 = vmax.f32 %v808, 0.0
        %v839 = vmax.f32 %v813, 0.0
        %v840 = vmax.f32 %v816, 0.0
        %v841 = vmax.f32 %v821, 0.0
        %v842 = vmax.f32 %v824, 0.0
        %v843 = vpack.c.bf16 %v828, %v827
        %v844 = vpack.c.bf16 %v830, %v829
        %v845 = vpack.c.bf16 %v832, %v831
        %v846 = vpack.c.bf16 %v834, %v833
        %v847 = vpack.c.bf16 %v836, %v835
        %v848 = vpack.c.bf16 %v838, %v837
        %v849 = vpack.c.bf16 %v840, %v839
        %v850 = vpack.c.bf16 %v842, %v841
        %v851 = vld [vmem:[%s3] sm:$0xf]
        %v852 = vld [vmem:[%s3 + $0x4] sm:$0xf]
        %v853 = vld [vmem:[%s3 + $0x8] sm:$0xf]
        %v854 = vld [vmem:[%s3 + $0xc] sm:$0xf]
        %v855 = vld [vmem:[%s3 + $0x10] sm:$0xf]
        %v856 = vld [vmem:[%s3 + $0x14] sm:$0xf]
        %v857 = vld [vmem:[%s3 + $0x18] sm:$0xf]
        %v858 = vld [vmem:[%s3 + $0x1c] sm:$0xf]
        %v859 = vld [vmem:[%s4] sm:$0xff]
        %v860 = vld [vmem:[%s4 + $0x8] sm:$0xff]
        %v861 = vld [vmem:[%s4 + $0x10] sm:$0xff]
        %v862 = vld [vmem:[%s4 + $0x18] sm:$0xff]
        %v863 = vld [vmem:[%s4 + $0x20] sm:$0xff]
        %v864 = vld [vmem:[%s4 + $0x28] sm:$0xff]
        %v865 = vld [vmem:[%s4 + $0x30] sm:$0xff]
        %v866 = vld [vmem:[%s4 + $0x38] sm:$0xff]
        %868 = vset.pattern.permute.xlu0 0
        %869 = vperm.xlu0 %868, %v859
        %v870 = vpop.permute.xlu0 %869
        %873 = vset.pattern.permute.xlu0 0
        %874 = vperm.xlu0 %873, %v860
        %v875 = vpop.permute.xlu0 %874
        %878 = vset.pattern.permute.xlu0 0
        %879 = vperm.xlu0 %878, %v861
        %v880 = vpop.permute.xlu0 %879
        %883 = vset.pattern.permute.xlu0 0
        %884 = vperm.xlu0 %883, %v862
        %v885 = vpop.permute.xlu0 %884
        %888 = vset.pattern.permute.xlu0 0
        %889 = vperm.xlu0 %888, %v863
        %v890 = vpop.permute.xlu0 %889
        %893 = vset.pattern.permute.xlu0 0
        %894 = vperm.xlu0 %893, %v864
        %v895 = vpop.permute.xlu0 %894
        %898 = vset.pattern.permute.xlu0 0
        %899 = vperm.xlu0 %898, %v865
        %v900 = vpop.permute.xlu0 %899
        %903 = vset.pattern.permute.xlu0 0
        %904 = vperm.xlu0 %903, %v866
        %v905 = vpop.permute.xlu0 %904
        %v915 = vunpack.c.l.b16 %v851
        %v916 = vunpack.c.l.b16 %v852
        %v917 = vunpack.c.l.b16 %v853
        %v918 = vunpack.c.l.b16 %v854
        %v919 = vunpack.c.l.b16 %v855
        %v920 = vunpack.c.l.b16 %v856
        %v921 = vunpack.c.l.b16 %v857
        %v922 = vunpack.c.l.b16 %v858
        %v923 = vpack.c.b16 %v916, %v915
        %v924 = vpack.c.b16 %v918, %v917
        %v925 = vpack.c.b16 %v920, %v919
        %v926 = vpack.c.b16 %v922, %v921
        %931 = vmatprep.subr.bf16.mxu0 0
        %932 = vmatpush1.bf16.msra.mxu0 %v843
        %933 = vmatprep.subr.bf16.mxu0 0
        %934 = vmatpush1.bf16.msra.mxu0 %v844
        %935 = vmatprep.subr.bf16.mxu0 0
        %936 = vmatpush1.bf16.msra.mxu0 %v845
        %937 = vmatprep.subr.bf16.mxu0 0
        %938 = vmatpush1.bf16.msra.mxu0 %v846
        %939 = vmatprep.subr.bf16.mxu0 0
        %940 = vmatpush1.bf16.msra.mxu0 %v847
        %941 = vmatprep.subr.bf16.mxu0 0
        %942 = vmatpush1.bf16.msra.mxu0 %v848
        %943 = vmatprep.subr.bf16.mxu0 0
        %944 = vmatpush1.bf16.msra.mxu0 %v849
        %945 = vmatprep.subr.bf16.mxu0 0
        %946 = vmatpush1.bf16.msra.mxu0 %v850
        %947 = vmatprep.subr.bf16.mxu0 0
        %948 = vmatpush1.bf16.msra.mxu0 0
        %949 = vmatprep.subr.bf16.mxu0 0
        %950 = vmatpush1.bf16.msra.mxu0 0
        %951 = vmatprep.subr.bf16.mxu0 0
        %952 = vmatpush1.bf16.msra.mxu0 0
        %953 = vmatprep.subr.bf16.mxu0 0
        %954 = vmatpush1.bf16.msra.mxu0 0
        %955 = vmatprep.subr.bf16.mxu0 0
        %956 = vmatpush1.bf16.msra.mxu0 0
        %957 = vmatprep.subr.bf16.mxu0 0
        %958 = vmatpush1.bf16.msra.mxu0 0
        %959 = vmatprep.subr.bf16.mxu0 0
        %960 = vmatpush1.bf16.msra.mxu0 0
        %961 = vmatprep.subr.bf16.mxu0 0
        %962 = vmatpush1.bf16.msra.mxu0 0
        %963 = vmatprep.mubr.bf16.mxu0 0
        %964 = vmatmul.mubr.bf16.gmra.mrb[0].mxu0 %v923
        %v965 = vpop.f32.mrb[0].mxu0
        %v966 = vadd.f32 %v870, %v965
        %v967 = vpop.f32.mrb[0].mxu0
        %v968 = vpop.f32.mrb[0].mxu0
        %v969 = vadd.f32 %v875, %v968
        %v970 = vpop.f32.mrb[0].mxu0
        %971 = vmatprep.mubr.bf16.mxu0 0
        %972 = vmatmul.mubr.bf16.gmra.mrb[0].mxu0 %v924
        %v973 = vpop.f32.mrb[0].mxu0
        %v974 = vadd.f32 %v880, %v973
        %v975 = vpop.f32.mrb[0].mxu0
        %v976 = vpop.f32.mrb[0].mxu0
        %v977 = vadd.f32 %v885, %v976
        %v978 = vpop.f32.mrb[0].mxu0
        %979 = vmatprep.mubr.bf16.mxu0 0
        %980 = vmatmul.mubr.bf16.gmra.mrb[0].mxu0 %v925
        %v981 = vpop.f32.mrb[0].mxu0
        %v982 = vadd.f32 %v890, %v981
        %v983 = vpop.f32.mrb[0].mxu0
        %v984 = vpop.f32.mrb[0].mxu0
        %v985 = vadd.f32 %v895, %v984
        %v986 = vpop.f32.mrb[0].mxu0
        %987 = vmatprep.mubr.bf16.mxu0 0
        %988 = vmatmul.mubr.bf16.gmra.mrb[0].mxu0 %v926
        %v989 = vpop.f32.mrb[0].mxu0
        %v990 = vadd.f32 %v900, %v989
        %v991 = vpop.f32.mrb[0].mxu0
        %v992 = vpop.f32.mrb[0].mxu0
        %v993 = vadd.f32 %v905, %v992
        %v994 = vpop.f32.mrb[0].mxu0
        %995 = vdwg.mxu0
        %v996 = vmax.f32 %v966, 0.0
        %v997 = vmax.f32 %v969, 0.0
        %v998 = vmax.f32 %v974, 0.0
        %v999 = vmax.f32 %v977, 0.0
        %v1000 = vmax.f32 %v982, 0.0
        %v1001 = vmax.f32 %v985, 0.0
        %v1002 = vmax.f32 %v990, 0.0
        %v1003 = vmax.f32 %v993, 0.0
        %v1004 = vpack.c.bf16 %v997, %v996
        %v1005 = vpack.c.bf16 %v999, %v998
        %v1006 = vpack.c.bf16 %v1001, %v1000
        %v1007 = vpack.c.bf16 %v1003, %v1002
        %v1008 = vld [vmem:[%s5] sm:$0xf]
        %v1009 = vld [vmem:[%s5 + $0x4] sm:$0x3]
        %v1010 = vld [vmem:[%s6] sm:$0xff]
        %v1011 = vld [vmem:[%s6 + $0x8] sm:$0xf]
        %1013 = vset.pattern.permute.xlu0 0
        %1014 = vperm.xlu0 %1013, %v1010
        %v1015 = vpop.permute.xlu0 %1014
        %1018 = vset.pattern.permute.xlu0 0
        %1019 = vperm.xlu0 %1018, %v1011
        %v1020 = vpop.permute.xlu0 %1019
        %v1024 = vunpack.c.l.b16 %v1008
        %v1025 = vunpack.c.l.b16 %v1009
        %v1026 = vpack.c.b16 %v1025, %v1024
        %vm1027 = vcmask 523264
        %v1029 = vsel %vm1027, %v1026, 0
        %1031 = vmatprep.subr.bf16.mxu0 0
        %1032 = vmatpush1.bf16.msra.mxu0 %v1004
        %1033 = vmatprep.subr.bf16.mxu0 0
        %1034 = vmatpush1.bf16.msra.mxu0 %v1005
        %1035 = vmatprep.subr.bf16.mxu0 0
        %1036 = vmatpush1.bf16.msra.mxu0 %v1006
        %1037 = vmatprep.subr.bf16.mxu0 0
        %1038 = vmatpush1.bf16.msra.mxu0 %v1007
        %1039 = vmatprep.subr.bf16.mxu0 0
        %1040 = vmatpush1.bf16.msra.mxu0 0
        %1041 = vmatprep.subr.bf16.mxu0 0
        %1042 = vmatpush1.bf16.msra.mxu0 0
        %1043 = vmatprep.subr.bf16.mxu0 0
        %1044 = vmatpush1.bf16.msra.mxu0 0
        %1045 = vmatprep.subr.bf16.mxu0 0
        %1046 = vmatpush1.bf16.msra.mxu0 0
        %1047 = vmatprep.subr.bf16.mxu0 0
        %1048 = vmatpush1.bf16.msra.mxu0 0
        %1049 = vmatprep.subr.bf16.mxu0 0
        %1050 = vmatpush1.bf16.msra.mxu0 0
        %1051 = vmatprep.subr.bf16.mxu0 0
        %1052 = vmatpush1.bf16.msra.mxu0 0
        %1053 = vmatprep.subr.bf16.mxu0 0
        %1054 = vmatpush1.bf16.msra.mxu0 0
        %1055 = vmatprep.subr.bf16.mxu0 0
        %1056 = vmatpush1.bf16.msra.mxu0 0
        %1057 = vmatprep.subr.bf16.mxu0 0
        %1058 = vmatpush1.bf16.msra.mxu0 0
        %1059 = vmatprep.subr.bf16.mxu0 0
        %1060 = vmatpush1.bf16.msra.mxu0 0
        %1061 = vmatprep.subr.bf16.mxu0 0
        %1062 = vmatpush1.bf16.msra.mxu0 0
        %1063 = vmatprep.mubr.bf16.mxu0 0
        %1064 = vmatmul.mubr.bf16.gmra.mrb[0].mxu0 %v1029
        %v1065 = vpop.f32.mrb[0].mxu0
        %v1066 = vadd.f32 %v1015, %v1065
        %v1067 = vpop.f32.mrb[0].mxu0
        %v1068 = vpop.f32.mrb[0].mxu0
        %v1069 = vadd.f32 %v1020, %v1068
        %v1070 = vpop.f32.mrb[0].mxu0
        %1071 = vdwg.mxu0
        %v1072 = vmax.f32 %v1066, 0.0
        %v1073 = vmax.f32 %v1069, 0.0
        %v1074 = vpack.c.bf16 %v1073, %v1072
        %v1075 = vld [vmem:[%s7] sm:$0xf]
        %v1076 = vld [vmem:[%s7 + $0x4] sm:$0x3]
        %v1077 = vld [vmem:[%s8] sm:$0xff]
        %v1078 = vld [vmem:[%s8 + $0x8] sm:$0xf]
        %1080 = vset.pattern.permute.xlu0 0
        %1081 = vperm.xlu0 %1080, %v1077
        %v1082 = vpop.permute.xlu0 %1081
        %1085 = vset.pattern.permute.xlu0 0
        %1086 = vperm.xlu0 %1085, %v1078
        %v1087 = vpop.permute.xlu0 %1086
        %v1091 = vunpack.c.l.b16 %v1075
        %v1092 = vunpack.c.l.b16 %v1076
        %v1093 = vpack.c.b16 %v1092, %v1091
        %vm1094 = vcmask 97280
        %v1096 = vsel %vm1094, %v1093, 0
        %v1099 = vsel %vm723, %v1074, 0
        %1101 = vmatprep.subr.bf16.mxu0 0
        %1102 = vmatpush1.bf16.msra.mxu0 %v1099
        %1103 = vmatprep.subr.bf16.mxu0 0
        %1104 = vmatpush1.bf16.msra.mxu0 0
        %1105 = vmatprep.subr.bf16.mxu0 0
        %1106 = vmatpush1.bf16.msra.mxu0 0
        %1107 = vmatprep.subr.bf16.mxu0 0
        %1108 = vmatpush1.bf16.msra.mxu0 0
        %1109 = vmatprep.subr.bf16.mxu0 0
        %1110 = vmatpush1.bf16.msra.mxu0 0
        %1111 = vmatprep.subr.bf16.mxu0 0
        %1112 = vmatpush1.bf16.msra.mxu0 0
        %1113 = vmatprep.subr.bf16.mxu0 0
        %1114 = vmatpush1.bf16.msra.mxu0 0
        %1115 = vmatprep.subr.bf16.mxu0 0
        %1116 = vmatpush1.bf16.msra.mxu0 0
        %1117 = vmatprep.subr.bf16.mxu0 0
        %1118 = vmatpush1.bf16.msra.mxu0 0
        %1119 = vmatprep.subr.bf16.mxu0 0
        %1120 = vmatpush1.bf16.msra.mxu0 0
        %1121 = vmatprep.subr.bf16.mxu0 0
        %1122 = vmatpush1.bf16.msra.mxu0 0
        %1123 = vmatprep.subr.bf16.mxu0 0
        %1124 = vmatpush1.bf16.msra.mxu0 0
        %1125 = vmatprep.subr.bf16.mxu0 0
        %1126 = vmatpush1.bf16.msra.mxu0 0
        %1127 = vmatprep.subr.bf16.mxu0 0
        %1128 = vmatpush1.bf16.msra.mxu0 0
        %1129 = vmatprep.subr.bf16.mxu0 0
        %1130 = vmatpush1.bf16.msra.mxu0 0
        %1131 = vmatprep.subr.bf16.mxu0 0
        %1132 = vmatpush1.bf16.msra.mxu0 0
        %1133 = vmatprep.mubr.bf16.mxu0 0
        %1134 = vmatmul.mubr.bf16.gmra.mrb[0].mxu0 %v1096
        %v1135 = vpop.f32.mrb[0].mxu0
        %v1136 = vadd.f32 %v1082, %v1135
        %v1137 = vpop.f32.mrb[0].mxu0
        %v1138 = vpop.f32.mrb[0].mxu0
        %v1139 = vadd.f32 %v1087, %v1138
        %v1140 = vpop.f32.mrb[0].mxu0
        %1141 = vdwg.mxu0
        %v1142 = vmax.f32 %v1136, 0.0
        %v1143 = vmax.f32 %v1139, 0.0
        %v1144 = vpack.c.bf16 %v1143, %v1142
        %v1145 = vld [vmem:[%s9] sm:$0xf]
        %v1146 = vld [vmem:[%s9 + $0x4] sm:$0xf]
        %v1147 = vld [vmem:[%s9 + $0x8] sm:$0xf]
        %v1148 = vld [vmem:[%s9 + $0xc] sm:$0xf]
        %v1149 = vld [vmem:[%s9 + $0x10] sm:$0xf]
        %v1150 = vld [vmem:[%s9 + $0x14] sm:$0xf]
        %v1151 = vld [vmem:[%s9 + $0x18] sm:$0xf]
        %v1152 = vld [vmem:[%s9 + $0x1c] sm:$0xf]
        %v1153 = vld [vmem:[%s10] sm:$0xff]
        %v1154 = vld [vmem:[%s10 + $0x8] sm:$0xff]
        %v1155 = vld [vmem:[%s10 + $0x10] sm:$0xff]
        %v1156 = vld [vmem:[%s10 + $0x18] sm:$0xff]
        %v1157 = vld [vmem:[%s10 + $0x20] sm:$0xff]
        %v1158 = vld [vmem:[%s10 + $0x28] sm:$0xff]
        %v1159 = vld [vmem:[%s10 + $0x30] sm:$0xff]
        %v1160 = vld [vmem:[%s10 + $0x38] sm:$0xff]
        %1162 = vset.pattern.permute.xlu0 0
        %1163 = vperm.xlu0 %1162, %v1153
        %v1164 = vpop.permute.xlu0 %1163
        %1167 = vset.pattern.permute.xlu0 0
        %1168 = vperm.xlu0 %1167, %v1154
        %v1169 = vpop.permute.xlu0 %1168
        %1172 = vset.pattern.permute.xlu0 0
        %1173 = vperm.xlu0 %1172, %v1155
        %v1174 = vpop.permute.xlu0 %1173
        %1177 = vset.pattern.permute.xlu0 0
        %1178 = vperm.xlu0 %1177, %v1156
        %v1179 = vpop.permute.xlu0 %1178
        %1182 = vset.pattern.permute.xlu0 0
        %1183 = vperm.xlu0 %1182, %v1157
        %v1184 = vpop.permute.xlu0 %1183
        %1187 = vset.pattern.permute.xlu0 0
        %1188 = vperm.xlu0 %1187, %v1158
        %v1189 = vpop.permute.xlu0 %1188
        %1192 = vset.pattern.permute.xlu0 0
        %1193 = vperm.xlu0 %1192, %v1159
        %v1194 = vpop.permute.xlu0 %1193
        %1197 = vset.pattern.permute.xlu0 0
        %1198 = vperm.xlu0 %1197, %v1160
        %v1199 = vpop.permute.xlu0 %1198
        %v1209 = vunpack.c.l.b16 %v1145
        %v1210 = vunpack.c.l.b16 %v1146
        %v1211 = vunpack.c.l.b16 %v1147
        %v1212 = vunpack.c.l.b16 %v1148
        %v1213 = vunpack.c.l.b16 %v1149
        %v1214 = vunpack.c.l.b16 %v1150
        %v1215 = vunpack.c.l.b16 %v1151
        %v1216 = vunpack.c.l.b16 %v1152
        %v1217 = vpack.c.b16 %v1210, %v1209
        %v1218 = vpack.c.b16 %v1212, %v1211
        %v1219 = vpack.c.b16 %v1214, %v1213
        %v1220 = vpack.c.b16 %v1216, %v1215
        %v1222 = vsel %vm1094, %v1217, 0
        %v1225 = vsel %vm1094, %v1218, 0
        %v1228 = vsel %vm1094, %v1219, 0
        %v1231 = vsel %vm1094, %v1220, 0
        %v1234 = vsel %vm723, %v1144, 0
        %1236 = vmatprep.subr.bf16.mxu0 0
        %1237 = vmatpush1.bf16.msra.mxu0 %v1234
        %1238 = vmatprep.subr.bf16.mxu0 0
        %1239 = vmatpush1.bf16.msra.mxu0 0
        %1240 = vmatprep.subr.bf16.mxu0 0
        %1241 = vmatpush1.bf16.msra.mxu0 0
        %1242 = vmatprep.subr.bf16.mxu0 0
        %1243 = vmatpush1.bf16.msra.mxu0 0
        %1244 = vmatprep.subr.bf16.mxu0 0
        %1245 = vmatpush1.bf16.msra.mxu0 0
        %1246 = vmatprep.subr.bf16.mxu0 0
        %1247 = vmatpush1.bf16.msra.mxu0 0
        %1248 = vmatprep.subr.bf16.mxu0 0
        %1249 = vmatpush1.bf16.msra.mxu0 0
        %1250 = vmatprep.subr.bf16.mxu0 0
        %1251 = vmatpush1.bf16.msra.mxu0 0
        %1252 = vmatprep.subr.bf16.mxu0 0
        %1253 = vmatpush1.bf16.msra.mxu0 0
        %1254 = vmatprep.subr.bf16.mxu0 0
        %1255 = vmatpush1.bf16.msra.mxu0 0
        %1256 = vmatprep.subr.bf16.mxu0 0
        %1257 = vmatpush1.bf16.msra.mxu0 0
        %1258 = vmatprep.subr.bf16.mxu0 0
        %1259 = vmatpush1.bf16.msra.mxu0 0
        %1260 = vmatprep.subr.bf16.mxu0 0
        %1261 = vmatpush1.bf16.msra.mxu0 0
        %1262 = vmatprep.subr.bf16.mxu0 0
        %1263 = vmatpush1.bf16.msra.mxu0 0
        %1264 = vmatprep.subr.bf16.mxu0 0
        %1265 = vmatpush1.bf16.msra.mxu0 0
        %1266 = vmatprep.subr.bf16.mxu0 0
        %1267 = vmatpush1.bf16.msra.mxu0 0
        %1268 = vmatprep.mubr.bf16.mxu0 0
        %1269 = vmatmul.mubr.bf16.gmra.mrb[0].mxu0 %v1222
        %v1270 = vpop.f32.mrb[0].mxu0
        %v1271 = vadd.f32 %v1164, %v1270
        %v1272 = vpop.f32.mrb[0].mxu0
        %v1273 = vpop.f32.mrb[0].mxu0
        %v1274 = vadd.f32 %v1169, %v1273
        %v1275 = vpop.f32.mrb[0].mxu0
        %1276 = vmatprep.mubr.bf16.mxu0 0
        %1277 = vmatmul.mubr.bf16.gmra.mrb[0].mxu0 %v1225
        %v1278 = vpop.f32.mrb[0].mxu0
        %v1279 = vadd.f32 %v1174, %v1278
        %v1280 = vpop.f32.mrb[0].mxu0
        %v1281 = vpop.f32.mrb[0].mxu0
        %v1282 = vadd.f32 %v1179, %v1281
        %v1283 = vpop.f32.mrb[0].mxu0
        %1284 = vmatprep.mubr.bf16.mxu0 0
        %1285 = vmatmul.mubr.bf16.gmra.mrb[0].mxu0 %v1228
        %v1286 = vpop.f32.mrb[0].mxu0
        %v1287 = vadd.f32 %v1184, %v1286
        %v1288 = vpop.f32.mrb[0].mxu0
        %v1289 = vpop.f32.mrb[0].mxu0
        %v1290 = vadd.f32 %v1189, %v1289
        %v1291 = vpop.f32.mrb[0].mxu0
        %1292 = vmatprep.mubr.bf16.mxu0 0
        %1293 = vmatmul.mubr.bf16.gmra.mrb[0].mxu0 %v1231
        %v1294 = vpop.f32.mrb[0].mxu0
        %v1295 = vadd.f32 %v1194, %v1294
        %v1296 = vpop.f32.mrb[0].mxu0
        %v1297 = vpop.f32.mrb[0].mxu0
        %v1298 = vadd.f32 %v1199, %v1297
        %v1299 = vpop.f32.mrb[0].mxu0
        %1300 = vdwg.mxu0
        %v1301 = vmax.f32 %v1271, 0.0
        %v1302 = vmax.f32 %v1274, 0.0
        %v1303 = vmax.f32 %v1279, 0.0
        %v1304 = vmax.f32 %v1282, 0.0
        %v1305 = vmax.f32 %v1287, 0.0
        %v1306 = vmax.f32 %v1290, 0.0
        %v1307 = vmax.f32 %v1295, 0.0
        %v1308 = vmax.f32 %v1298, 0.0
        %v1309 = vpack.c.bf16 %v1302, %v1301
        %v1310 = vpack.c.bf16 %v1304, %v1303
        %v1311 = vpack.c.bf16 %v1306, %v1305
        %v1312 = vpack.c.bf16 %v1308, %v1307
        %v1313 = vld [vmem:[%s11] sm:$0xf]
        %v1314 = vld [vmem:[%s11 + $0x4] sm:$0xf]
        %v1315 = vld [vmem:[%s11 + $0x8] sm:$0xf]
        %v1316 = vld [vmem:[%s11 + $0xc] sm:$0xf]
        %v1317 = vld [vmem:[%s11 + $0x10] sm:$0xf]
        %v1318 = vld [vmem:[%s11 + $0x14] sm:$0xf]
        %v1319 = vld [vmem:[%s11 + $0x18] sm:$0xf]
        %v1320 = vld [vmem:[%s11 + $0x1c] sm:$0xf]
        %v1321 = vld [vmem:[%s11 + $0x20] sm:$0xf]
        %v1322 = vld [vmem:[%s11 + $0x24] sm:$0xf]
        %v1323 = vld [vmem:[%s11 + $0x28] sm:$0xf]
        %v1324 = vld [vmem:[%s11 + $0x2c] sm:$0xf]
        %v1325 = vld [vmem:[%s11 + $0x30] sm:$0xf]
        %v1326 = vld [vmem:[%s11 + $0x34] sm:$0xf]
        %v1327 = vld [vmem:[%s11 + $0x38] sm:$0xf]
        %v1328 = vld [vmem:[%s11 + $0x3c] sm:$0xf]
        %v1329 = vld [vmem:[%s12] sm:$0xff]
        %v1330 = vld [vmem:[%s12 + $0x8] sm:$0xff]
        %v1331 = vld [vmem:[%s12 + $0x10] sm:$0xff]
        %v1332 = vld [vmem:[%s12 + $0x18] sm:$0xff]
        %v1333 = vld [vmem:[%s12 + $0x20] sm:$0xff]
        %v1334 = vld [vmem:[%s12 + $0x28] sm:$0xff]
        %v1335 = vld [vmem:[%s12 + $0x30] sm:$0xff]
        %v1336 = vld [vmem:[%s12 + $0x38] sm:$0xff]
        %v1337 = vld [vmem:[%s12 + $0x40] sm:$0xff]
        %v1338 = vld [vmem:[%s12 + $0x48] sm:$0xff]
        %v1339 = vld [vmem:[%s12 + $0x50] sm:$0xff]
        %v1340 = vld [vmem:[%s12 + $0x58] sm:$0xff]
        %v1341 = vld [vmem:[%s12 + $0x60] sm:$0xff]
        %v1342 = vld [vmem:[%s12 + $0x68] sm:$0xff]
        %v1343 = vld [vmem:[%s12 + $0x70] sm:$0xff]
        %v1344 = vld [vmem:[%s12 + $0x78] sm:$0xff]
        %1346 = vset.pattern.permute.xlu0 0
        %1347 = vperm.xlu0 %1346, %v1329
        %v1348 = vpop.permute.xlu0 %1347
        %1351 = vset.pattern.permute.xlu0 0
        %1352 = vperm.xlu0 %1351, %v1330
        %v1353 = vpop.permute.xlu0 %1352
        %1356 = vset.pattern.permute.xlu0 0
        %1357 = vperm.xlu0 %1356, %v1331
        %v1358 = vpop.permute.xlu0 %1357
        %1361 = vset.pattern.permute.xlu0 0
        %1362 = vperm.xlu0 %1361, %v1332
        %v1363 = vpop.permute.xlu0 %1362
        %1366 = vset.pattern.permute.xlu0 0
        %1367 = vperm.xlu0 %1366, %v1333
        %v1368 = vpop.permute.xlu0 %1367
        %1371 = vset.pattern.permute.xlu0 0
        %1372 = vperm.xlu0 %1371, %v1334
        %v1373 = vpop.permute.xlu0 %1372
        %1376 = vset.pattern.permute.xlu0 0
        %1377 = vperm.xlu0 %1376, %v1335
        %v1378 = vpop.permute.xlu0 %1377
        %1381 = vset.pattern.permute.xlu0 0
        %1382 = vperm.xlu0 %1381, %v1336
        %v1383 = vpop.permute.xlu0 %1382
        %1386 = vset.pattern.permute.xlu0 0
        %1387 = vperm.xlu0 %1386, %v1337
        %v1388 = vpop.permute.xlu0 %1387
        %1391 = vset.pattern.permute.xlu0 0
        %1392 = vperm.xlu0 %1391, %v1338
        %v1393 = vpop.permute.xlu0 %1392
        %1396 = vset.pattern.permute.xlu0 0
        %1397 = vperm.xlu0 %1396, %v1339
        %v1398 = vpop.permute.xlu0 %1397
        %1401 = vset.pattern.permute.xlu0 0
        %1402 = vperm.xlu0 %1401, %v1340
        %v1403 = vpop.permute.xlu0 %1402
        %1406 = vset.pattern.permute.xlu0 0
        %1407 = vperm.xlu0 %1406, %v1341
        %v1408 = vpop.permute.xlu0 %1407
        %1411 = vset.pattern.permute.xlu0 0
        %1412 = vperm.xlu0 %1411, %v1342
        %v1413 = vpop.permute.xlu0 %1412
        %1416 = vset.pattern.permute.xlu0 0
        %1417 = vperm.xlu0 %1416, %v1343
        %v1418 = vpop.permute.xlu0 %1417
        %1421 = vset.pattern.permute.xlu0 0
        %1422 = vperm.xlu0 %1421, %v1344
        %v1423 = vpop.permute.xlu0 %1422
        %v1441 = vunpack.c.l.b16 %v1313
        %v1442 = vunpack.c.l.b16 %v1314
        %v1443 = vunpack.c.l.b16 %v1315
        %v1444 = vunpack.c.l.b16 %v1316
        %v1445 = vunpack.c.l.b16 %v1317
        %v1446 = vunpack.c.l.b16 %v1318
        %v1447 = vunpack.c.l.b16 %v1319
        %v1448 = vunpack.c.l.b16 %v1320
        %v1449 = vunpack.c.l.b16 %v1321
        %v1450 = vunpack.c.l.b16 %v1322
        %v1451 = vunpack.c.l.b16 %v1323
        %v1452 = vunpack.c.l.b16 %v1324
        %v1453 = vunpack.c.l.b16 %v1325
        %v1454 = vunpack.c.l.b16 %v1326
        %v1455 = vunpack.c.l.b16 %v1327
        %v1456 = vunpack.c.l.b16 %v1328
        %v1457 = vpack.c.b16 %v1442, %v1441
        %v1458 = vpack.c.b16 %v1444, %v1443
        %v1459 = vpack.c.b16 %v1446, %v1445
        %v1460 = vpack.c.b16 %v1448, %v1447
        %v1461 = vpack.c.b16 %v1450, %v1449
        %v1462 = vpack.c.b16 %v1452, %v1451
        %v1463 = vpack.c.b16 %v1454, %v1453
        %v1464 = vpack.c.b16 %v1456, %v1455
        %v1466 = vsel %vm1027, %v1457, 0
        %v1469 = vsel %vm1027, %v1458, 0
        %v1472 = vsel %vm1027, %v1459, 0
        %v1475 = vsel %vm1027, %v1460, 0
        %v1478 = vsel %vm1027, %v1461, 0
        %v1481 = vsel %vm1027, %v1462, 0
        %v1484 = vsel %vm1027, %v1463, 0
        %v1487 = vsel %vm1027, %v1464, 0
        %1489 = vmatprep.subr.bf16.mxu0 0
        %1490 = vmatpush1.bf16.msra.mxu0 %v1309
        %1491 = vmatprep.subr.bf16.mxu0 0
        %1492 = vmatpush1.bf16.msra.mxu0 %v1310
        %1493 = vmatprep.subr.bf16.mxu0 0
        %1494 = vmatpush1.bf16.msra.mxu0 %v1311
        %1495 = vmatprep.subr.bf16.mxu0 0
        %1496 = vmatpush1.bf16.msra.mxu0 %v1312
        %1497 = vmatprep.subr.bf16.mxu0 0
        %1498 = vmatpush1.bf16.msra.mxu0 0
        %1499 = vmatprep.subr.bf16.mxu0 0
        %1500 = vmatpush1.bf16.msra.mxu0 0
        %1501 = vmatprep.subr.bf16.mxu0 0
        %1502 = vmatpush1.bf16.msra.mxu0 0
        %1503 = vmatprep.subr.bf16.mxu0 0
        %1504 = vmatpush1.bf16.msra.mxu0 0
        %1505 = vmatprep.subr.bf16.mxu0 0
        %1506 = vmatpush1.bf16.msra.mxu0 0
        %1507 = vmatprep.subr.bf16.mxu0 0
        %1508 = vmatpush1.bf16.msra.mxu0 0
        %1509 = vmatprep.subr.bf16.mxu0 0
        %1510 = vmatpush1.bf16.msra.mxu0 0
        %1511 = vmatprep.subr.bf16.mxu0 0
        %1512 = vmatpush1.bf16.msra.mxu0 0
        %1513 = vmatprep.subr.bf16.mxu0 0
        %1514 = vmatpush1.bf16.msra.mxu0 0
        %1515 = vmatprep.subr.bf16.mxu0 0
        %1516 = vmatpush1.bf16.msra.mxu0 0
        %1517 = vmatprep.subr.bf16.mxu0 0
        %1518 = vmatpush1.bf16.msra.mxu0 0
        %1519 = vmatprep.subr.bf16.mxu0 0
        %1520 = vmatpush1.bf16.msra.mxu0 0
        %1521 = vmatprep.mubr.bf16.mxu0 0
        %1522 = vmatmul.mubr.bf16.gmra.mrb[0].mxu0 %v1466
        %v1523 = vpop.f32.mrb[0].mxu0
        %v1524 = vadd.f32 %v1348, %v1523
        %v1525 = vpop.f32.mrb[0].mxu0
        %v1526 = vpop.f32.mrb[0].mxu0
        %v1527 = vadd.f32 %v1353, %v1526
        %v1528 = vpop.f32.mrb[0].mxu0
        %1529 = vmatprep.mubr.bf16.mxu0 0
        %1530 = vmatmul.mubr.bf16.gmra.mrb[0].mxu0 %v1469
        %v1531 = vpop.f32.mrb[0].mxu0
        %v1532 = vadd.f32 %v1358, %v1531
        %v1533 = vpop.f32.mrb[0].mxu0
        %v1534 = vpop.f32.mrb[0].mxu0
        %v1535 = vadd.f32 %v1363, %v1534
        %v1536 = vpop.f32.mrb[0].mxu0
        %1537 = vmatprep.mubr.bf16.mxu0 0
        %1538 = vmatmul.mubr.bf16.gmra.mrb[0].mxu0 %v1472
        %v1539 = vpop.f32.mrb[0].mxu0
        %v1540 = vadd.f32 %v1368, %v1539
        %v1541 = vpop.f32.mrb[0].mxu0
        %v1542 = vpop.f32.mrb[0].mxu0
        %v1543 = vadd.f32 %v1373, %v1542
        %v1544 = vpop.f32.mrb[0].mxu0
        %1545 = vmatprep.mubr.bf16.mxu0 0
        %1546 = vmatmul.mubr.bf16.gmra.mrb[0].mxu0 %v1475
        %v1547 = vpop.f32.mrb[0].mxu0
        %v1548 = vadd.f32 %v1378, %v1547
        %v1549 = vpop.f32.mrb[0].mxu0
        %v1550 = vpop.f32.mrb[0].mxu0
        %v1551 = vadd.f32 %v1383, %v1550
        %v1552 = vpop.f32.mrb[0].mxu0
        %1553 = vmatprep.mubr.bf16.mxu0 0
        %1554 = vmatmul.mubr.bf16.gmra.mrb[0].mxu0 %v1478
        %v1555 = vpop.f32.mrb[0].mxu0
        %v1556 = vadd.f32 %v1388, %v1555
        %v1557 = vpop.f32.mrb[0].mxu0
        %v1558 = vpop.f32.mrb[0].mxu0
        %v1559 = vadd.f32 %v1393, %v1558
        %v1560 = vpop.f32.mrb[0].mxu0
        %1561 = vmatprep.mubr.bf16.mxu0 0
        %1562 = vmatmul.mubr.bf16.gmra.mrb[0].mxu0 %v1481
        %v1563 = vpop.f32.mrb[0].mxu0
        %v1564 = vadd.f32 %v1398, %v1563
        %v1565 = vpop.f32.mrb[0].mxu0
        %v1566 = vpop.f32.mrb[0].mxu0
        %v1567 = vadd.f32 %v1403, %v1566
        %v1568 = vpop.f32.mrb[0].mxu0
        %1569 = vmatprep.mubr.bf16.mxu0 0
        %1570 = vmatmul.mubr.bf16.gmra.mrb[0].mxu0 %v1484
        %v1571 = vpop.f32.mrb[0].mxu0
        %v1572 = vadd.f32 %v1408, %v1571
        %v1573 = vpop.f32.mrb[0].mxu0
        %v1574 = vpop.f32.mrb[0].mxu0
        %v1575 = vadd.f32 %v1413, %v1574
        %v1576 = vpop.f32.mrb[0].mxu0
        %1577 = vmatprep.mubr.bf16.mxu0 0
        %1578 = vmatmul.mubr.bf16.gmra.mrb[0].mxu0 %v1487
        %v1579 = vpop.f32.mrb[0].mxu0
        %v1580 = vadd.f32 %v1418, %v1579
        %v1581 = vpop.f32.mrb[0].mxu0
        %v1582 = vpop.f32.mrb[0].mxu0
        %v1583 = vadd.f32 %v1423, %v1582
        %v1584 = vpop.f32.mrb[0].mxu0
        %1585 = vdwg.mxu0
        %v1586 = vmax.f32 %v1524, 0.0
        %v1587 = vmax.f32 %v1527, 0.0
        %v1588 = vmax.f32 %v1532, 0.0
        %v1589 = vmax.f32 %v1535, 0.0
        %v1590 = vmax.f32 %v1540, 0.0
        %v1591 = vmax.f32 %v1543, 0.0
        %v1592 = vmax.f32 %v1548, 0.0
        %v1593 = vmax.f32 %v1551, 0.0
        %v1594 = vmax.f32 %v1556, 0.0
        %v1595 = vmax.f32 %v1559, 0.0
        %v1596 = vmax.f32 %v1564, 0.0
        %v1597 = vmax.f32 %v1567, 0.0
        %v1598 = vmax.f32 %v1572, 0.0
        %v1599 = vmax.f32 %v1575, 0.0
        %v1600 = vmax.f32 %v1580, 0.0
        %v1601 = vmax.f32 %v1583, 0.0
        %v1602 = vpack.c.bf16 %v1587, %v1586
        %v1603 = vpack.c.bf16 %v1589, %v1588
        %v1604 = vpack.c.bf16 %v1591, %v1590
        %v1605 = vpack.c.bf16 %v1593, %v1592
        %v1606 = vpack.c.bf16 %v1595, %v1594
        %v1607 = vpack.c.bf16 %v1597, %v1596
        %v1608 = vpack.c.bf16 %v1599, %v1598
        %v1609 = vpack.c.bf16 %v1601, %v1600
        %v1610 = vld [vmem:[%s13] sm:$0xf]
        %v1611 = vld [vmem:[%s13 + $0x4] sm:$0xf]
        %v1612 = vld [vmem:[%s13 + $0x8] sm:$0xf]
        %v1613 = vld [vmem:[%s13 + $0xc] sm:$0x7]
        %v1614 = vld [vmem:[%s14] sm:$0xff]
        %v1615 = vld [vmem:[%s14 + $0x8] sm:$0xff]
        %v1616 = vld [vmem:[%s14 + $0x10] sm:$0xff]
        %v1617 = vld [vmem:[%s14 + $0x18] sm:$0x1f]
        %1619 = vset.pattern.permute.xlu0 0
        %1620 = vperm.xlu0 %1619, %v1614
        %v1621 = vpop.permute.xlu0 %1620
        %1624 = vset.pattern.permute.xlu0 0
        %1625 = vperm.xlu0 %1624, %v1615
        %v1626 = vpop.permute.xlu0 %1625
        %1629 = vset.pattern.permute.xlu0 0
        %1630 = vperm.xlu0 %1629, %v1616
        %v1631 = vpop.permute.xlu0 %1630
        %1634 = vset.pattern.permute.xlu0 0
        %1635 = vperm.xlu0 %1634, %v1617
        %v1636 = vpop.permute.xlu0 %1635
        %v1642 = vunpack.c.l.b16 %v1610
        %v1643 = vunpack.c.l.b16 %v1611
        %v1644 = vunpack.c.l.b16 %v1612
        %v1645 = vunpack.c.l.b16 %v1613
        %v1646 = vpack.c.b16 %v1643, %v1642
        %v1647 = vpack.c.b16 %v1645, %v1644
        %1650 = vmatprep.subr.bf16.mxu0 0
        %1651 = vmatpush1.bf16.msra.mxu0 %v1602
        %1652 = vmatprep.subr.bf16.mxu0 0
        %1653 = vmatpush1.bf16.msra.mxu0 %v1603
        %1654 = vmatprep.subr.bf16.mxu0 0
        %1655 = vmatpush1.bf16.msra.mxu0 %v1604
        %1656 = vmatprep.subr.bf16.mxu0 0
        %1657 = vmatpush1.bf16.msra.mxu0 %v1605
        %1658 = vmatprep.subr.bf16.mxu0 0
        %1659 = vmatpush1.bf16.msra.mxu0 %v1606
        %1660 = vmatprep.subr.bf16.mxu0 0
        %1661 = vmatpush1.bf16.msra.mxu0 %v1607
        %1662 = vmatprep.subr.bf16.mxu0 0
        %1663 = vmatpush1.bf16.msra.mxu0 %v1608
        %1664 = vmatprep.subr.bf16.mxu0 0
        %1665 = vmatpush1.bf16.msra.mxu0 %v1609
        %1666 = vmatprep.subr.bf16.mxu0 0
        %1667 = vmatpush1.bf16.msra.mxu0 0
        %1668 = vmatprep.subr.bf16.mxu0 0
        %1669 = vmatpush1.bf16.msra.mxu0 0
        %1670 = vmatprep.subr.bf16.mxu0 0
        %1671 = vmatpush1.bf16.msra.mxu0 0
        %1672 = vmatprep.subr.bf16.mxu0 0
        %1673 = vmatpush1.bf16.msra.mxu0 0
        %1674 = vmatprep.subr.bf16.mxu0 0
        %1675 = vmatpush1.bf16.msra.mxu0 0
        %1676 = vmatprep.subr.bf16.mxu0 0
        %1677 = vmatpush1.bf16.msra.mxu0 0
        %1678 = vmatprep.subr.bf16.mxu0 0
        %1679 = vmatpush1.bf16.msra.mxu0 0
        %1680 = vmatprep.subr.bf16.mxu0 0
        %1681 = vmatpush1.bf16.msra.mxu0 0
        %1682 = vmatprep.mubr.bf16.mxu0 0
        %1683 = vmatmul.mubr.bf16.gmra.mrb[0].mxu0 %v1646
        %v1684 = vpop.f32.mrb[0].mxu0
        %v1685 = vadd.f32 %v1621, %v1684
        %v1686 = vpop.f32.mrb[0].mxu0
        %v1687 = vpop.f32.mrb[0].mxu0
        %v1688 = vadd.f32 %v1626, %v1687
        %v1689 = vpop.f32.mrb[0].mxu0
        %1690 = vmatprep.mubr.bf16.mxu0 0
        %1691 = vmatmul.mubr.bf16.gmra.mrb[0].mxu0 %v1647
        %v1692 = vpop.f32.mrb[0].mxu0
        %v1693 = vadd.f32 %v1631, %v1692
        %v1694 = vpop.f32.mrb[0].mxu0
        %v1695 = vpop.f32.mrb[0].mxu0
        %v1696 = vadd.f32 %v1636, %v1695
        %v1697 = vpop.f32.mrb[0].mxu0
        %1698 = vdwg.mxu0
        %v1699 = vlaneseq
        %v1700 = vshrl.u32 %v1699, 7
        %v1701 = vadd.s32 %v1700, 8
        %v1702 = vadd.s32 %v1700, 16
        %v1703 = vadd.s32 %v1700, 24
        %v1704 = vmul.f32 %v1685, 0.5
        %v1705 = vmul.f32 %v1688, 0.5
        %v1706 = vmul.f32 %v1693, 0.5
        %v1707 = vmul.f32 %v1696, 0.5
        %v1708 = vtanh.pop %v1704
        %v1709 = vtanh.pop %v1705
        %v1710 = vtanh.pop %v1706
        %v1711 = vtanh.pop %v1707
        %v1712 = vadd.f32 %v1708, 1.0
        %v1713 = vadd.f32 %v1709, 1.0
        %v1714 = vadd.f32 %v1710, 1.0
        %v1715 = vadd.f32 %v1711, 1.0
        %v1716 = vmul.f32 %v1712, 0.5
        %v1717 = vmul.f32 %v1713, 0.5
        %v1718 = vmul.f32 %v1714, 0.5
        %v1719 = vmul.f32 %v1715, 0.5
        %vm1720 = vcmp.ge.s32.totalorder %v1700, 2
        %vm1721 = vcmp.ge.s32.totalorder %v1701, 2
        %vm1722 = vcmp.ge.s32.totalorder %v1702, 2
        %vm1723 = vcmp.ge.s32.totalorder %v1703, 2
        %v1724 = vsel %vm1720, 1, 0
        %v1725 = vsel %vm1721, 1, 0
        %v1726 = vsel %vm1722, 1, 0
        %v1727 = vsel %vm1723, 1, 0
        %vm1728 = vcmp.eq.s32.totalorder %v1724, 1
        %vm1729 = vcmp.eq.s32.totalorder %v1725, 1
        %vm1730 = vcmp.eq.s32.totalorder %v1726, 1
        %vm1731 = vcmp.eq.s32.totalorder %v1727, 1
        %v1732 = vsel %vm1728, %v1716, %v1685
        %v1733 = vsel %vm1729, %v1717, %v1688
        %v1734 = vsel %vm1730, %v1718, %v1693
        %v1735 = vsel %vm1731, %v1719, %v1696
        %1736 = vst [vmem:[%s538] sm:$0xff] %v1732
        %1737 = vst [vmem:[%s538 + $0x8] sm:$0xff] %v1733
        %1738 = vst [vmem:[%s538 + $0x10] sm:$0xff] %v1734
        %1739 = vst [vmem:[%s538 + $0x18] sm:$0x1f] %v1735
        %s1740 = sand.u32 %s357, 1
        %s1741 = scalar_lea.sflag [#allocation4], %s1740
        %s1742 = sand.u32 %s357, 1
        %s1743 = smul.addr %s1742, 32
        %s1744 = scalar_lea.vmem [#allocation3], %s1743
        // Predicated region
        $region119: #{autoencoder_forward.1} parent=113 // pred_check
          %p1745 = pneg %p367
        $region120: #{autoencoder_forward.1} parent=113 // pred_check_branch
          %1747 = sbr.rel (%p1745) target = $region122
        $region121: #{autoencoder_forward.1} parent=113 // pred_region
          %s1749 = ssub.s32 512, 512
          %1750 = vsyncadd %s1741, %s1749
          %s1751 = smul.addr %s29, 128
          %s1752 = scalar_lea.hbm %s15, %s1751
          %s1753 = sshll.u32 %s1744, 4
          %s1754 = int_to_ptr.vmem [resolvable:$true] %s1753
          %1759 = dma.vmem_to_hbm [thread:$0]  %s1754, 512, %s1752, %s1741, 128, 256, 8
        $region122: #{autoencoder_forward.1} parent=113 // pred_fallthru
          _
      $region114: #{autoencoder_forward.1} parent=5 // pred_fallthru
        _
      %p1760 = scmp.le.s32.totalorder 2, %s24
      // Predicated region
      $region123: #{autoencoder_forward.1} parent=5 // pred_check
        %p1761 = pneg %p1760
      $region124: #{autoencoder_forward.1} parent=5 // pred_check_branch
        %1763 = sbr.rel (%p1761) target = $region126
      $region125: #{autoencoder_forward.1} parent=5 // pred_region
        %s1764 = ssub.s32 %s24, 2
        // Predicated region
        $region127: #{autoencoder_forward.1} parent=125 // pred_check
          %p1765 = pneg %p373
        $region128: #{autoencoder_forward.1} parent=125 // pred_check_branch
          %1767 = sbr.rel (%p1765) target = $region130
        $region129: #{autoencoder_forward.1} parent=125 // pred_region
          %s1768 = sand.u32 %s358, 1
          %s1769 = scalar_lea.sflag [#allocation4], %s1768
          %s1770 = sand.u32 %s358, 1
          %s1771 = smul.addr %s1770, 32
          %s1772 = scalar_lea.vmem [#allocation3], %s1771
          %1773 = dma.done %s1769, 512
        $region130: #{autoencoder_forward.1} parent=125 // pred_fallthru
          _
      $region126: #{autoencoder_forward.1} parent=5 // pred_fallthru
        _
    $region6: #{autoencoder_forward.1} parent=1 // loop_footer
      %s28 = sadd.s32 1, %s24
    $region7: #{autoencoder_forward.1} parent=1 // loop_footer_branch
      %23 = sbr.rel target = $region3
    $region8: #{autoencoder_forward.1} parent=1 // loop_exit
      _
    %1774 = vsyncpa [#allocation4], 1
    %s1775 = scalar_lea.sflag [#allocation4], 1
    %1776 = vsyncpa %s1775, 1

</llo_original>
